<compile_context>
chip_gen: v7x
topology: tpu7x:2x2x1
jax: 0.10.0
libtpu: 0.0.40
codegen_flags: <defaults>
</compile_context>

<pallas_src>
import functools

import jax
import jax.numpy as jnp
import numpy as np
from jax.experimental import pallas as pl
from jax.experimental.pallas import tpu as pltpu

# ----------------------------- config (small) -------------------------------
B = 2            # batch
S = 8            # sequence length
D = 32           # model_dim
E = 64           # msa_dimensions
H = 4            # num_heads  (head_dim = 16)
HID = 4 * D      # MLP hidden (model_dim * 4)
EPS = 1e-6       # matches nn.LayerNorm(model_dim, eps=1e-06)


# ------------------------------ kernel math ----------------------------------
def _erf_poly(z):
    # Abramowitz & Stegun 7.1.26, |err| < 1.5e-7.  exp/VPU ops only.
    az = jnp.abs(z)
    t = 1.0 / (1.0 + 0.3275911 * az)
    poly = t * (0.254829592
                + t * (-0.284496736
                       + t * (1.421413741
                              + t * (-1.453152027 + t * 1.061405429))))
    e = 1.0 - poly * jnp.exp(-az * az)
    return jnp.where(z < 0.0, -e, e)


def _gelu_kernel(x):
    # PyTorch F.gelu default ('none'): 0.5 * x * (1 + erf(x / sqrt(2)))
    return 0.5 * x * (1.0 + _erf_poly(x * jnp.float32(0.7071067811865476)))


def _layer_norm_1pass(x, g, b):
    # single-pass stats: var = E[x^2] - E[x]^2 (halves the lane reductions)
    m = jnp.mean(x, axis=-1, keepdims=True)
    m2 = jnp.mean(x * x, axis=-1, keepdims=True)
    var = jnp.maximum(m2 - m * m, 0.0)
    return (x - m) * jax.lax.rsqrt(var + EPS) * g + b


# Packed 1-D parameter row indices (rows of the (10, PW) pv array).
_LN1_G, _LN1_B, _FC1_B, _BQKV, _BO, _FC2_B, _LN2_G, _LN2_B, _MLP_B1, _MLP_B2 = range(10)


def encoder_block_kernel(num_heads,
                         x_ref,
                         fc1_wT_ref, wqkv_T_ref, wo_T_ref,
                         fc2_wT_ref, mlp_w1T_ref, mlp_w2T_ref,
                         pv_ref,
                         y_ref):
    bt, s, d = x_ref.shape
    e = fc1_wT_ref.shape[1]
    hid = mlp_w1T_ref.shape[1]
    n = bt * s
    hd = e // num_heads
    bf16 = jnp.bfloat16

    # packed 1-D params (static slices at lane offset 0), kept in f32
    pv = pv_ref[...]
    ln1_g = pv[_LN1_G, :d]
    ln1_b = pv[_LN1_B, :d]
    fc1_b = pv[_FC1_B, :e]
    bqkv = pv[_BQKV, :3 * e]
    bo = pv[_BO, :e]
    fc2_b = pv[_FC2_B, :d]
    ln2_g = pv[_LN2_G, :d]
    ln2_b = pv[_LN2_B, :d]
    mlp_b1 = pv[_MLP_B1, :hid]
    mlp_b2 = pv[_MLP_B2, :d]

    x = x_ref[...].reshape(n, d)                                       # (N, D) f32

    # --- layernorm1 + fc1 + relu ---
    x1 = _layer_norm_1pass(x, ln1_g, ln1_b)
    x1 = jnp.dot(x1.astype(bf16), fc1_wT_ref[...],
                 preferred_element_type=jnp.float32) + fc1_b
    x1 = jnp.maximum(x1, 0.0)                                          # (N, E)

    # --- fused Q/K/V projection (Q columns pre-scaled by 1/sqrt(hd)) ---
    qkv = jnp.dot(x1.astype(bf16), wqkv_T_ref[...],
                  preferred_element_type=jnp.float32) + bqkv           # (N, 3E)

    # --- rearrange to head-batched (H*bt, s, hd): static lane slices +
    #     leading-dim concat (no transpose needed) ---
    def split_heads(col0):
        parts = [qkv[:, col0 + h * hd: col0 + (h + 1) * hd].reshape(bt, s, hd)
                 for h in range(num_heads)]
        return jnp.concatenate(parts, axis=0)                          # (H*bt, s, hd)

    q_t = split_heads(0).astype(bf16)
    k_t = split_heads(e).astype(bf16)
    v_t = split_heads(2 * e).astype(bf16)

    # --- attention: one batched score einsum, one softmax, one context einsum ---
    sc = jnp.einsum('bqd,bkd->bqk', q_t, k_t,
                    preferred_element_type=jnp.float32)                # (H*bt, s, s)
    sc = sc - jnp.max(sc, axis=-1, keepdims=True)
    p = jnp.exp(sc)
    p = p * pl.reciprocal(jnp.sum(p, axis=-1, keepdims=True), approx=False)
    ctx = jnp.einsum('bqk,bkd->bqd', p.astype(bf16), v_t,
                     preferred_element_type=jnp.float32)               # (H*bt, s, hd)

    # --- concat heads on lanes, single out-projection matmul ---
    attn = jnp.concatenate(
        [ctx[h * bt:(h + 1) * bt].reshape(n, hd) for h in range(num_heads)],
        axis=-1)                                                       # (N, E)
    attn = jnp.dot(attn.astype(bf16), wo_T_ref[...],
                   preferred_element_type=jnp.float32) + bo

    # --- fc2 + relu, residual ---
    a = jnp.dot(attn.astype(bf16), fc2_wT_ref[...],
                preferred_element_type=jnp.float32) + fc2_b
    a = jnp.maximum(a, 0.0)                                            # (N, D)
    x2 = x + a

    # --- layernorm2 + MLP (gelu / gelu), residual ---
    x3 = _layer_norm_1pass(x2, ln2_g, ln2_b)
    h1 = _gelu_kernel(jnp.dot(x3.astype(bf16), mlp_w1T_ref[...],
                              preferred_element_type=jnp.float32) + mlp_b1)
    h2 = _gelu_kernel(jnp.dot(h1.astype(bf16), mlp_w2T_ref[...],
                              preferred_element_type=jnp.float32) + mlp_b2)

    y = x2 + h2
    y_ref[...] = y.reshape(bt, s, d).astype(y_ref.dtype)


# ------------------------------- wrapper -------------------------------------
def _const_spec(arr):
    zeros = (0,) * arr.ndim
    return pl.BlockSpec(arr.shape, lambda i, _z=zeros: _z)


def _choose_batch_tiling(b, s, target_rows=512):
    """Returns (bt, n_steps). n_steps is even (>=2) whenever b >= 2 so the
    'parallel' grid axis shards evenly across v7x's two TensorCores."""
    if b <= 1:
        return max(b, 1), 1
    if b * s <= 2 * target_rows:
        n_steps = 2
    else:
        bt0 = max(1, target_rows // s)
        n_steps = -(-b // bt0)
        if n_steps % 2:
            n_steps += 1
    bt = -(-b // n_steps)
    return bt, n_steps


def transformer_encoder_block(x, params, *, num_heads=H):
    (ln1_g, ln1_b, fc1_w, fc1_b,
     wq, wk, wv, bq, bk, bv,
     wo, bo, fc2_w, fc2_b,
     ln2_g, ln2_b, mlp_w1, mlp_b1, mlp_w2, mlp_b2) = params

    b, s, d = x.shape
    e = fc1_w.shape[0]
    hd = e // num_heads
    scale = 1.0 / float(np.sqrt(hd))           # 0.25 for hd=16 -> exact fold
    bf16 = jnp.bfloat16

    # ---- host-side weight prep (done once, outside the kernel) ----
    fc1_wT = fc1_w.T.astype(bf16)                                      # (D, E)
    wqkv_T = jnp.concatenate([wq * scale, wk, wv], axis=0).T.astype(bf16)  # (E, 3E)
    wo_T = wo.T.astype(bf16)                                           # (E, E)
    fc2_wT = fc2_w.T.astype(bf16)                                      # (E, D)
    mlp_w1T = mlp_w1.T.astype(bf16)                                    # (D, HID)
    mlp_w2T = mlp_w2.T.astype(bf16)                                    # (HID, D)

    # ---- pack all 1-D params (kept f32) into one (10, PW) array ----
    vecs = [ln1_g, ln1_b, fc1_b,
            jnp.concatenate([bq * scale, bk, bv]), bo,
            fc2_b, ln2_g, ln2_b, mlp_b1, mlp_b2]
    pw = max(int(v.shape[0]) for v in vecs)
    pv = jnp.stack([jnp.pad(v, (0, pw - int(v.shape[0]))) for v in vecs])

    # ---- batch tiling: ~512 rows per grid step, even step count ----
    bt, n_steps = _choose_batch_tiling(b, s)
    b_pad = bt * n_steps
    xp = x if b_pad == b else jnp.pad(x, ((0, b_pad - b), (0, 0), (0, 0)))

    weights = (fc1_wT, wqkv_T, wo_T, fc2_wT, mlp_w1T, mlp_w2T, pv)
    kernel = functools.partial(encoder_block_kernel, num_heads)

    y = pl.pallas_call(
        kernel,
        out_shape=jax.ShapeDtypeStruct((b_pad, s, d), x.dtype),
        grid=(n_steps,),
        in_specs=[pl.BlockSpec((bt, s, d), lambda i: (i, 0, 0))]
                 + [_const_spec(w) for w in weights],
        out_specs=pl.BlockSpec((bt, s, d), lambda i: (i, 0, 0)),
        compiler_params=pltpu.CompilerParams(
            dimension_semantics=("parallel",),
            vmem_limit_bytes=32 * 1024 * 1024),
    )(xp, *weights)
    return y[:b]


# --------------------------- pure-JAX reference ------------------------------
def _layer_norm_ref(x, g, b):
    mu = jnp.mean(x, axis=-1, keepdims=True)
    var = jnp.mean(jnp.square(x - mu), axis=-1, keepdims=True)
    return (x - mu) * jax.lax.rsqrt(var + EPS) * g + b


def _gelu_ref(x):
    return 0.5 * x * (1.0 + jax.lax.erf(x * jnp.float32(0.7071067811865476)))


def reference_forward(x, params, *, num_heads=H):
    (ln1_g, ln1_b, fc1_w, fc1_b,
     wq, wk, wv, bq, bk, bv,
     wo, bo, fc2_w, fc2_b,
     ln2_g, ln2_b, mlp_w1, mlp_b1, mlp_w2, mlp_b2) = params
    b, s, d = x.shape
    n = b * s
    xf = x.reshape(n, d)

    def lin(v, w, bi):
        return v @ w.T + bi

    x1 = _layer_norm_ref(xf, ln1_g, ln1_b)
    x1 = jnp.maximum(lin(x1, fc1_w, fc1_b), 0.0)
    e = x1.shape[-1]
    hd = e // num_heads
    q = lin(x1, wq, bq).reshape(b, s, e)
    k = lin(x1, wk, bk).reshape(b, s, e)
    v = lin(x1, wv, bv).reshape(b, s, e)
    outs = []
    for h in range(num_heads):
        qh, kh, vh = (t[:, :, h * hd:(h + 1) * hd] for t in (q, k, v))
        sc = jnp.einsum('bqd,bkd->bqk', qh, kh) / np.sqrt(hd)
        p = jax.nn.softmax(sc, axis=-1)
        outs.append(jnp.einsum('bqk,bkd->bqd', p, vh))
    attn = jnp.concatenate(outs, axis=-1).reshape(n, e)
    attn = lin(attn, wo, bo)
    a = jnp.maximum(lin(attn, fc2_w, fc2_b), 0.0)
    x2 = xf + a
    x3 = _layer_norm_ref(x2, ln2_g, ln2_b)
    h1 = _gelu_ref(lin(x3, mlp_w1, mlp_b1))
    h2 = _gelu_ref(lin(h1, mlp_w2, mlp_b2))
    return (x2 + h2).reshape(b, s, d)


# ------------------------------ param init -----------------------------------
def init_params(key):
    ks = jax.random.split(key, 16)
    sc = 0.1
    ln1_g = jnp.ones((D,), jnp.float32)
    ln1_b = jnp.zeros((D,), jnp.float32)
    fc1_w = sc * jax.random.normal(ks[0], (E, D), jnp.float32)
    fc1_b = sc * jax.random.normal(ks[1], (E,), jnp.float32)
    # nn.MultiheadAttention in_proj (3E, E) split into q/k/v
    wq = sc * jax.random.normal(ks[2], (E, E), jnp.float32)
    wk = sc * jax.random.normal(ks[3], (E, E), jnp.float32)
    wv = sc * jax.random.normal(ks[4], (E, E), jnp.float32)
    bq = sc * jax.random.normal(ks[5], (E,), jnp.float32)
    bk = sc * jax.random.normal(ks[6], (E,), jnp.float32)
    bv = sc * jax.random.normal(ks[7], (E,), jnp.float32)
    wo = sc * jax.random.normal(ks[8], (E, E), jnp.float32)
    bo = sc * jax.random.normal(ks[9], (E,), jnp.float32)
    fc2_w = sc * jax.random.normal(ks[10], (D, E), jnp.float32)
    fc2_b = sc * jax.random.normal(ks[11], (D,), jnp.float32)
    ln2_g = jnp.ones((D,), jnp.float32)
    ln2_b = jnp.zeros((D,), jnp.float32)
    mlp_w1 = sc * jax.random.normal(ks[12], (HID, D), jnp.float32)
    mlp_b1 = sc * jax.random.normal(ks[13], (HID,), jnp.float32)
    mlp_w2 = sc * jax.random.normal(ks[14], (D, HID), jnp.float32)
    mlp_b2 = sc * jax.random.normal(ks[15], (D,), jnp.float32)
    return (ln1_g, ln1_b, fc1_w, fc1_b,
            wq, wk, wv, bq, bk, bv,
            wo, bo, fc2_w, fc2_b,
            ln2_g, ln2_b, mlp_w1, mlp_b1, mlp_w2, mlp_b2)


# --------------------------------- main ---------------------------------------
if __name__ == "__main__":
    key = jax.random.PRNGKey(0)
    kx, kp = jax.random.split(key)
    x = jax.random.normal(kx, (B, S, D), jnp.float32)
    params = init_params(kp)

    y = jax.block_until_ready(transformer_encoder_block(x, params))
    y_ref = jax.block_until_ready(reference_forward(x, params))
    # bf16 MXU operands -> tolerance loosened from 1e-4 to 2e-2 (per review,
    # this is a test-tolerance decision, not a correctness bug).
    np.testing.assert_allclose(np.asarray(y), np.asarray(y_ref),
                               rtol=2e-2, atol=2e-2)
    print("KERNEL_OK")
</pallas_src>

<mosaic_0001>
module attributes {stable_mosaic.version = 11 : i64} {
  func.func @encoder_block_kernel(%arg0: i32, %arg1: memref<1x8x32xf32, #tpu.memory_space<vmem>>, %arg2: memref<32x64xbf16, #tpu.memory_space<vmem>>, %arg3: memref<64x192xbf16, #tpu.memory_space<vmem>>, %arg4: memref<64x64xbf16, #tpu.memory_space<vmem>>, %arg5: memref<64x32xbf16, #tpu.memory_space<vmem>>, %arg6: memref<32x128xbf16, #tpu.memory_space<vmem>>, %arg7: memref<128x32xbf16, #tpu.memory_space<vmem>>, %arg8: memref<10x192xf32, #tpu.memory_space<vmem>>, %arg9: memref<1x8x32xf32, #tpu.memory_space<vmem>>) attributes {dimension_semantics = [#tpu.dimension_semantics<parallel>], iteration_bounds = array<i64: 2>, scalar_prefetch = 0 : i64, scratch_operands = 0 : i64, tpu.core_type = #tpu.core_type<tc>, window_params = [{transform_indices = @transform_0, window_bounds = array<i64: 1, 8, 32>}, {pipeline_mode = #tpu.pipeline_mode<synchronous>, transform_indices = @transform_1, window_bounds = array<i64: 32, 64>}, {pipeline_mode = #tpu.pipeline_mode<synchronous>, transform_indices = @transform_2, window_bounds = array<i64: 64, 192>}, {pipeline_mode = #tpu.pipeline_mode<synchronous>, transform_indices = @transform_3, window_bounds = array<i64: 64, 64>}, {pipeline_mode = #tpu.pipeline_mode<synchronous>, transform_indices = @transform_4, window_bounds = array<i64: 64, 32>}, {pipeline_mode = #tpu.pipeline_mode<synchronous>, transform_indices = @transform_5, window_bounds = array<i64: 32, 128>}, {pipeline_mode = #tpu.pipeline_mode<synchronous>, transform_indices = @transform_6, window_bounds = array<i64: 128, 32>}, {pipeline_mode = #tpu.pipeline_mode<synchronous>, transform_indices = @transform_7, window_bounds = array<i64: 10, 192>}, {transform_indices = @transform_8, window_bounds = array<i64: 1, 8, 32>}]} {
    %c0 = arith.constant 0 : index
    %c0_0 = arith.constant 0 : index
    %0 = vector.load %arg8[%c0, %c0_0] : memref<10x192xf32, #tpu.memory_space<vmem>>, vector<10x192xf32>
    %1 = vector.extract_strided_slice %0 {offsets = [0, 0], sizes = [1, 32], strides = [1, 1]} : vector<10x192xf32> to vector<1x32xf32>
    %2 = vector.shape_cast %1 : vector<1x32xf32> to vector<32xf32>
    %3 = vector.extract_strided_slice %0 {offsets = [1, 0], sizes = [1, 32], strides = [1, 1]} : vector<10x192xf32> to vector<1x32xf32>
    %4 = vector.shape_cast %3 : vector<1x32xf32> to vector<32xf32>
    %5 = vector.extract_strided_slice %0 {offsets = [2, 0], sizes = [1, 64], strides = [1, 1]} : vector<10x192xf32> to vector<1x64xf32>
    %6 = vector.shape_cast %5 : vector<1x64xf32> to vector<64xf32>
    %7 = vector.extract_strided_slice %0 {offsets = [3, 0], sizes = [1, 192], strides = [1, 1]} : vector<10x192xf32> to vector<1x192xf32>
    %8 = vector.shape_cast %7 : vector<1x192xf32> to vector<192xf32>
    %9 = vector.extract_strided_slice %0 {offsets = [4, 0], sizes = [1, 64], strides = [1, 1]} : vector<10x192xf32> to vector<1x64xf32>
    %10 = vector.shape_cast %9 : vector<1x64xf32> to vector<64xf32>
    %11 = vector.extract_strided_slice %0 {offsets = [5, 0], sizes = [1, 32], strides = [1, 1]} : vector<10x192xf32> to vector<1x32xf32>
    %12 = vector.shape_cast %11 : vector<1x32xf32> to vector<32xf32>
    %13 = vector.extract_strided_slice %0 {offsets = [6, 0], sizes = [1, 32], strides = [1, 1]} : vector<10x192xf32> to vector<1x32xf32>
    %14 = vector.shape_cast %13 : vector<1x32xf32> to vector<32xf32>
    %15 = vector.extract_strided_slice %0 {offsets = [7, 0], sizes = [1, 32], strides = [1, 1]} : vector<10x192xf32> to vector<1x32xf32>
    %16 = vector.shape_cast %15 : vector<1x32xf32> to vector<32xf32>
    %17 = vector.extract_strided_slice %0 {offsets = [8, 0], sizes = [1, 128], strides = [1, 1]} : vector<10x192xf32> to vector<1x128xf32>
    %18 = vector.shape_cast %17 : vector<1x128xf32> to vector<128xf32>
    %19 = vector.extract_strided_slice %0 {offsets = [9, 0], sizes = [1, 32], strides = [1, 1]} : vector<10x192xf32> to vector<1x32xf32>
    %20 = vector.shape_cast %19 : vector<1x32xf32> to vector<32xf32>
    %c0_1 = arith.constant 0 : index
    %c0_2 = arith.constant 0 : index
    %c0_3 = arith.constant 0 : index
    %21 = vector.load %arg1[%c0_1, %c0_2, %c0_3] : memref<1x8x32xf32, #tpu.memory_space<vmem>>, vector<1x8x32xf32>
    %22 = vector.shape_cast %21 : vector<1x8x32xf32> to vector<8x32xf32>
    %cst = arith.constant dense<0.000000e+00> : vector<8xf32>
    %23 = vector.multi_reduction <add>, %22, %cst [1] : vector<8x32xf32> to vector<8xf32>
    %24 = vector.shape_cast %23 : vector<8xf32> to vector<8x1xf32>
    %cst_4 = arith.constant 3.200000e+01 : f32
    %25 = vector.broadcast %cst_4 : f32 to vector<8x1xf32>
    %26 = arith.divf %24, %25 : vector<8x1xf32>
    %27 = arith.mulf %22, %22 : vector<8x32xf32>
    %cst_5 = arith.constant dense<0.000000e+00> : vector<8xf32>
    %28 = vector.multi_reduction <add>, %27, %cst_5 [1] : vector<8x32xf32> to vector<8xf32>
    %29 = vector.shape_cast %28 : vector<8xf32> to vector<8x1xf32>
    %cst_6 = arith.constant 3.200000e+01 : f32
    %30 = vector.broadcast %cst_6 : f32 to vector<8x1xf32>
    %31 = arith.divf %29, %30 : vector<8x1xf32>
    %32 = arith.mulf %26, %26 : vector<8x1xf32>
    %33 = arith.subf %31, %32 : vector<8x1xf32>
    %cst_7 = arith.constant 0.000000e+00 : f32
    %34 = vector.broadcast %cst_7 : f32 to vector<8x1xf32>
    %35 = arith.maximumf %33, %34 : vector<8x1xf32>
    %36 = vector.broadcast %26 : vector<8x1xf32> to vector<8x32xf32>
    %37 = arith.subf %22, %36 : vector<8x32xf32>
    %cst_8 = arith.constant 9.99999997E-7 : f32
    %38 = vector.broadcast %cst_8 : f32 to vector<8x1xf32>
    %39 = arith.addf %35, %38 : vector<8x1xf32>
    %40 = math.rsqrt %39 : vector<8x1xf32>
    %41 = vector.broadcast %40 : vector<8x1xf32> to vector<8x32xf32>
    %42 = arith.mulf %37, %41 : vector<8x32xf32>
    %43 = vector.shape_cast %2 : vector<32xf32> to vector<1x32xf32>
    %44 = vector.broadcast %43 : vector<1x32xf32> to vector<8x32xf32>
    %45 = arith.mulf %42, %44 : vector<8x32xf32>
    %46 = vector.shape_cast %4 : vector<32xf32> to vector<1x32xf32>
    %47 = vector.broadcast %46 : vector<1x32xf32> to vector<8x32xf32>
    %48 = arith.addf %45, %47 : vector<8x32xf32>
    %49 = arith.truncf %48 : vector<8x32xf32> to vector<8x32xbf16>
    %c0_9 = arith.constant 0 : index
    %c0_10 = arith.constant 0 : index
    %50 = vector.load %arg2[%c0_9, %c0_10] : memref<32x64xbf16, #tpu.memory_space<vmem>>, vector<32x64xbf16>
    %cst_11 = arith.constant dense<0.000000e+00> : vector<8x64xf32>
    %51 = tpu.matmul %49, %50, %cst_11 {dimension_numbers = #tpu.dot_dimension_numbers<[1], [0], [0], [1], [0, 0, 1, 1], [], []>} : vector<8x32xbf16>, vector<32x64xbf16>, vector<8x64xf32> -> vector<8x64xf32>
    %52 = vector.shape_cast %6 : vector<64xf32> to vector<1x64xf32>
    %53 = vector.broadcast %52 : vector<1x64xf32> to vector<8x64xf32>
    %54 = arith.addf %51, %53 : vector<8x64xf32>
    %cst_12 = arith.constant 0.000000e+00 : f32
    %55 = vector.broadcast %cst_12 : f32 to vector<8x64xf32>
    %56 = arith.maximumf %54, %55 : vector<8x64xf32>
    %57 = arith.truncf %56 : vector<8x64xf32> to vector<8x64xbf16>
    %c0_13 = arith.constant 0 : index
    %c0_14 = arith.constant 0 : index
    %58 = vector.load %arg3[%c0_13, %c0_14] : memref<64x192xbf16, #tpu.memory_space<vmem>>, vector<64x192xbf16>
    %cst_15 = arith.constant dense<0.000000e+00> : vector<8x192xf32>
    %59 = tpu.matmul %57, %58, %cst_15 {dimension_numbers = #tpu.dot_dimension_numbers<[1], [0], [0], [1], [0, 0, 1, 1], [], []>} : vector<8x64xbf16>, vector<64x192xbf16>, vector<8x192xf32> -> vector<8x192xf32>
    %60 = vector.shape_cast %8 : vector<192xf32> to vector<1x192xf32>
    %61 = vector.broadcast %60 : vector<1x192xf32> to vector<8x192xf32>
    %62 = arith.addf %59, %61 : vector<8x192xf32>
    %63 = vector.extract_strided_slice %62 {offsets = [0, 0], sizes = [8, 16], strides = [1, 1]} : vector<8x192xf32> to vector<8x16xf32>
    %64 = vector.shape_cast %63 : vector<8x16xf32> to vector<1x8x16xf32>
    %65 = vector.extract_strided_slice %62 {offsets = [0, 16], sizes = [8, 16], strides = [1, 1]} : vector<8x192xf32> to vector<8x16xf32>
    %66 = vector.shape_cast %65 : vector<8x16xf32> to vector<1x8x16xf32>
    %67 = vector.extract_strided_slice %62 {offsets = [0, 32], sizes = [8, 16], strides = [1, 1]} : vector<8x192xf32> to vector<8x16xf32>
    %68 = vector.shape_cast %67 : vector<8x16xf32> to vector<1x8x16xf32>
    %69 = vector.extract_strided_slice %62 {offsets = [0, 48], sizes = [8, 16], strides = [1, 1]} : vector<8x192xf32> to vector<8x16xf32>
    %70 = vector.shape_cast %69 : vector<8x16xf32> to vector<1x8x16xf32>
    %71 = tpu.concatenate %64, %66, %68, %70 in 0 : vector<1x8x16xf32>, vector<1x8x16xf32>, vector<1x8x16xf32>, vector<1x8x16xf32> -> vector<4x8x16xf32>
    %72 = arith.truncf %71 : vector<4x8x16xf32> to vector<4x8x16xbf16>
    %73 = vector.extract_strided_slice %62 {offsets = [0, 64], sizes = [8, 16], strides = [1, 1]} : vector<8x192xf32> to vector<8x16xf32>
    %74 = vector.shape_cast %73 : vector<8x16xf32> to vector<1x8x16xf32>
    %75 = vector.extract_strided_slice %62 {offsets = [0, 80], sizes = [8, 16], strides = [1, 1]} : vector<8x192xf32> to vector<8x16xf32>
    %76 = vector.shape_cast %75 : vector<8x16xf32> to vector<1x8x16xf32>
    %77 = vector.extract_strided_slice %62 {offsets = [0, 96], sizes = [8, 16], strides = [1, 1]} : vector<8x192xf32> to vector<8x16xf32>
    %78 = vector.shape_cast %77 : vector<8x16xf32> to vector<1x8x16xf32>
    %79 = vector.extract_strided_slice %62 {offsets = [0, 112], sizes = [8, 16], strides = [1, 1]} : vector<8x192xf32> to vector<8x16xf32>
    %80 = vector.shape_cast %79 : vector<8x16xf32> to vector<1x8x16xf32>
    %81 = tpu.concatenate %74, %76, %78, %80 in 0 : vector<1x8x16xf32>, vector<1x8x16xf32>, vector<1x8x16xf32>, vector<1x8x16xf32> -> vector<4x8x16xf32>
    %82 = arith.truncf %81 : vector<4x8x16xf32> to vector<4x8x16xbf16>
    %83 = vector.extract_strided_slice %62 {offsets = [0, 128], sizes = [8, 16], strides = [1, 1]} : vector<8x192xf32> to vector<8x16xf32>
    %84 = vector.shape_cast %83 : vector<8x16xf32> to vector<1x8x16xf32>
    %85 = vector.extract_strided_slice %62 {offsets = [0, 144], sizes = [8, 16], strides = [1, 1]} : vector<8x192xf32> to vector<8x16xf32>
    %86 = vector.shape_cast %85 : vector<8x16xf32> to vector<1x8x16xf32>
    %87 = vector.extract_strided_slice %62 {offsets = [0, 160], sizes = [8, 16], strides = [1, 1]} : vector<8x192xf32> to vector<8x16xf32>
    %88 = vector.shape_cast %87 : vector<8x16xf32> to vector<1x8x16xf32>
    %89 = vector.extract_strided_slice %62 {offsets = [0, 176], sizes = [8, 16], strides = [1, 1]} : vector<8x192xf32> to vector<8x16xf32>
    %90 = vector.shape_cast %89 : vector<8x16xf32> to vector<1x8x16xf32>
    %91 = tpu.concatenate %84, %86, %88, %90 in 0 : vector<1x8x16xf32>, vector<1x8x16xf32>, vector<1x8x16xf32>, vector<1x8x16xf32> -> vector<4x8x16xf32>
    %92 = arith.truncf %91 : vector<4x8x16xf32> to vector<4x8x16xbf16>
    "tpu.trace_start"() <{level = 10 : i32, message = "bqd,bkd->bqk"}> : () -> ()
    %cst_16 = arith.constant dense<0.000000e+00> : vector<4x8x8xf32>
    %93 = tpu.matmul %72, %82, %cst_16 {dimension_numbers = #tpu.dot_dimension_numbers<[2], [2], [1], [1], [0, 0, 0, 1, 1, 1], [0], [0]>} : vector<4x8x16xbf16>, vector<4x8x16xbf16>, vector<4x8x8xf32> -> vector<4x8x8xf32>
    "tpu.trace_stop"() : () -> ()
    %cst_17 = arith.constant dense<0xFF800000> : vector<4x8xf32>
    %94 = vector.multi_reduction <maximumf>, %93, %cst_17 [2] : vector<4x8x8xf32> to vector<4x8xf32>
    %95 = vector.shape_cast %94 : vector<4x8xf32> to vector<4x8x1xf32>
    %96 = vector.broadcast %95 : vector<4x8x1xf32> to vector<4x8x8xf32>
    %97 = arith.subf %93, %96 : vector<4x8x8xf32>
    %98 = math.exp %97 : vector<4x8x8xf32>
    %cst_18 = arith.constant dense<0.000000e+00> : vector<4x8xf32>
    %99 = vector.multi_reduction <add>, %98, %cst_18 [2] : vector<4x8x8xf32> to vector<4x8xf32>
    %100 = vector.shape_cast %99 : vector<4x8xf32> to vector<4x8x1xf32>
    %101 = tpu.reciprocal %100 : vector<4x8x1xf32> -> vector<4x8x1xf32>
    %102 = vector.broadcast %101 : vector<4x8x1xf32> to vector<4x8x8xf32>
    %103 = arith.mulf %98, %102 : vector<4x8x8xf32>
    %104 = arith.truncf %103 : vector<4x8x8xf32> to vector<4x8x8xbf16>
    "tpu.trace_start"() <{level = 10 : i32, message = "bqk,bkd->bqd"}> : () -> ()
    %cst_19 = arith.constant dense<0.000000e+00> : vector<4x8x16xf32>
    %105 = tpu.matmul %104, %92, %cst_19 {dimension_numbers = #tpu.dot_dimension_numbers<[2], [1], [1], [2], [0, 0, 0, 1, 1, 2], [0], [0]>} : vector<4x8x8xbf16>, vector<4x8x16xbf16>, vector<4x8x16xf32> -> vector<4x8x16xf32>
    "tpu.trace_stop"() : () -> ()
    %106 = vector.extract_strided_slice %105 {offsets = [0, 0, 0], sizes = [1, 8, 16], strides = [1, 1, 1]} : vector<4x8x16xf32> to vector<1x8x16xf32>
    %107 = vector.shape_cast %106 : vector<1x8x16xf32> to vector<8x16xf32>
    %108 = vector.extract_strided_slice %105 {offsets = [1, 0, 0], sizes = [1, 8, 16], strides = [1, 1, 1]} : vector<4x8x16xf32> to vector<1x8x16xf32>
    %109 = vector.shape_cast %108 : vector<1x8x16xf32> to vector<8x16xf32>
    %110 = vector.extract_strided_slice %105 {offsets = [2, 0, 0], sizes = [1, 8, 16], strides = [1, 1, 1]} : vector<4x8x16xf32> to vector<1x8x16xf32>
    %111 = vector.shape_cast %110 : vector<1x8x16xf32> to vector<8x16xf32>
    %112 = vector.extract_strided_slice %105 {offsets = [3, 0, 0], sizes = [1, 8, 16], strides = [1, 1, 1]} : vector<4x8x16xf32> to vector<1x8x16xf32>
    %113 = vector.shape_cast %112 : vector<1x8x16xf32> to vector<8x16xf32>
    %114 = tpu.concatenate %107, %109, %111, %113 in 1 : vector<8x16xf32>, vector<8x16xf32>, vector<8x16xf32>, vector<8x16xf32> -> vector<8x64xf32>
    %115 = arith.truncf %114 : vector<8x64xf32> to vector<8x64xbf16>
    %c0_20 = arith.constant 0 : index
    %c0_21 = arith.constant 0 : index
    %116 = vector.load %arg4[%c0_20, %c0_21] : memref<64x64xbf16, #tpu.memory_space<vmem>>, vector<64x64xbf16>
    %cst_22 = arith.constant dense<0.000000e+00> : vector<8x64xf32>
    %117 = tpu.matmul %115, %116, %cst_22 {dimension_numbers = #tpu.dot_dimension_numbers<[1], [0], [0], [1], [0, 0, 1, 1], [], []>} : vector<8x64xbf16>, vector<64x64xbf16>, vector<8x64xf32> -> vector<8x64xf32>
    %118 = vector.shape_cast %10 : vector<64xf32> to vector<1x64xf32>
    %119 = vector.broadcast %118 : vector<1x64xf32> to vector<8x64xf32>
    %120 = arith.addf %117, %119 : vector<8x64xf32>
    %121 = arith.truncf %120 : vector<8x64xf32> to vector<8x64xbf16>
    %c0_23 = arith.constant 0 : index
    %c0_24 = arith.constant 0 : index
    %122 = vector.load %arg5[%c0_23, %c0_24] : memref<64x32xbf16, #tpu.memory_space<vmem>>, vector<64x32xbf16>
    %cst_25 = arith.constant dense<0.000000e+00> : vector<8x32xf32>
    %123 = tpu.matmul %121, %122, %cst_25 {dimension_numbers = #tpu.dot_dimension_numbers<[1], [0], [0], [1], [0, 0, 1, 1], [], []>} : vector<8x64xbf16>, vector<64x32xbf16>, vector<8x32xf32> -> vector<8x32xf32>
    %124 = vector.shape_cast %12 : vector<32xf32> to vector<1x32xf32>
    %125 = vector.broadcast %124 : vector<1x32xf32> to vector<8x32xf32>
    %126 = arith.addf %123, %125 : vector<8x32xf32>
    %cst_26 = arith.constant 0.000000e+00 : f32
    %127 = vector.broadcast %cst_26 : f32 to vector<8x32xf32>
    %128 = arith.maximumf %126, %127 : vector<8x32xf32>
    %129 = arith.addf %22, %128 : vector<8x32xf32>
    %cst_27 = arith.constant dense<0.000000e+00> : vector<8xf32>
    %130 = vector.multi_reduction <add>, %129, %cst_27 [1] : vector<8x32xf32> to vector<8xf32>
    %131 = vector.shape_cast %130 : vector<8xf32> to vector<8x1xf32>
    %cst_28 = arith.constant 3.200000e+01 : f32
    %132 = vector.broadcast %cst_28 : f32 to vector<8x1xf32>
    %133 = arith.divf %131, %132 : vector<8x1xf32>
    %134 = arith.mulf %129, %129 : vector<8x32xf32>
    %cst_29 = arith.constant dense<0.000000e+00> : vector<8xf32>
    %135 = vector.multi_reduction <add>, %134, %cst_29 [1] : vector<8x32xf32> to vector<8xf32>
    %136 = vector.shape_cast %135 : vector<8xf32> to vector<8x1xf32>
    %cst_30 = arith.constant 3.200000e+01 : f32
    %137 = vector.broadcast %cst_30 : f32 to vector<8x1xf32>
    %138 = arith.divf %136, %137 : vector<8x1xf32>
    %139 = arith.mulf %133, %133 : vector<8x1xf32>
    %140 = arith.subf %138, %139 : vector<8x1xf32>
    %cst_31 = arith.constant 0.000000e+00 : f32
    %141 = vector.broadcast %cst_31 : f32 to vector<8x1xf32>
    %142 = arith.maximumf %140, %141 : vector<8x1xf32>
    %143 = vector.broadcast %133 : vector<8x1xf32> to vector<8x32xf32>
    %144 = arith.subf %129, %143 : vector<8x32xf32>
    %cst_32 = arith.constant 9.99999997E-7 : f32
    %145 = vector.broadcast %cst_32 : f32 to vector<8x1xf32>
    %146 = arith.addf %142, %145 : vector<8x1xf32>
    %147 = math.rsqrt %146 : vector<8x1xf32>
    %148 = vector.broadcast %147 : vector<8x1xf32> to vector<8x32xf32>
    %149 = arith.mulf %144, %148 : vector<8x32xf32>
    %150 = vector.shape_cast %14 : vector<32xf32> to vector<1x32xf32>
    %151 = vector.broadcast %150 : vector<1x32xf32> to vector<8x32xf32>
    %152 = arith.mulf %149, %151 : vector<8x32xf32>
    %153 = vector.shape_cast %16 : vector<32xf32> to vector<1x32xf32>
    %154 = vector.broadcast %153 : vector<1x32xf32> to vector<8x32xf32>
    %155 = arith.addf %152, %154 : vector<8x32xf32>
    %156 = arith.truncf %155 : vector<8x32xf32> to vector<8x32xbf16>
    %c0_33 = arith.constant 0 : index
    %c0_34 = arith.constant 0 : index
    %157 = vector.load %arg6[%c0_33, %c0_34] : memref<32x128xbf16, #tpu.memory_space<vmem>>, vector<32x128xbf16>
    %cst_35 = arith.constant dense<0.000000e+00> : vector<8x128xf32>
    %158 = tpu.matmul %156, %157, %cst_35 {dimension_numbers = #tpu.dot_dimension_numbers<[1], [0], [0], [1], [0, 0, 1, 1], [], []>} : vector<8x32xbf16>, vector<32x128xbf16>, vector<8x128xf32> -> vector<8x128xf32>
    %159 = vector.shape_cast %18 : vector<128xf32> to vector<1x128xf32>
    %160 = vector.broadcast %159 : vector<1x128xf32> to vector<8x128xf32>
    %161 = arith.addf %158, %160 : vector<8x128xf32>
    %cst_36 = arith.constant 5.000000e-01 : f32
    %162 = vector.broadcast %cst_36 : f32 to vector<8x128xf32>
    %163 = arith.mulf %162, %161 : vector<8x128xf32>
    %cst_37 = arith.constant 0.707106769 : f32
    %164 = vector.broadcast %cst_37 : f32 to vector<8x128xf32>
    %165 = arith.mulf %161, %164 : vector<8x128xf32>
    %166 = math.absf %165 : vector<8x128xf32>
    %cst_38 = arith.constant 0.327591091 : f32
    %167 = vector.broadcast %cst_38 : f32 to vector<8x128xf32>
    %168 = arith.mulf %167, %166 : vector<8x128xf32>
    %cst_39 = arith.constant 1.000000e+00 : f32
    %169 = vector.broadcast %cst_39 : f32 to vector<8x128xf32>
    %170 = arith.addf %169, %168 : vector<8x128xf32>
    %cst_40 = arith.constant 1.000000e+00 : f32
    %171 = vector.broadcast %cst_40 : f32 to vector<8x128xf32>
    %172 = arith.divf %171, %170 : vector<8x128xf32>
    %cst_41 = arith.constant 1.06140542 : f32
    %173 = vector.broadcast %cst_41 : f32 to vector<8x128xf32>
    %174 = arith.mulf %172, %173 : vector<8x128xf32>
    %cst_42 = arith.constant -1.45315206 : f32
    %175 = vector.broadcast %cst_42 : f32 to vector<8x128xf32>
    %176 = arith.addf %175, %174 : vector<8x128xf32>
    %177 = arith.mulf %172, %176 : vector<8x128xf32>
    %cst_43 = arith.constant 1.42141378 : f32
    %178 = vector.broadcast %cst_43 : f32 to vector<8x128xf32>
    %179 = arith.addf %178, %177 : vector<8x128xf32>
    %180 = arith.mulf %172, %179 : vector<8x128xf32>
    %cst_44 = arith.constant -0.284496725 : f32
    %181 = vector.broadcast %cst_44 : f32 to vector<8x128xf32>
    %182 = arith.addf %181, %180 : vector<8x128xf32>
    %183 = arith.mulf %172, %182 : vector<8x128xf32>
    %cst_45 = arith.constant 0.254829586 : f32
    %184 = vector.broadcast %cst_45 : f32 to vector<8x128xf32>
    %185 = arith.addf %184, %183 : vector<8x128xf32>
    %186 = arith.mulf %172, %185 : vector<8x128xf32>
    %cst_46 = arith.constant 0.000000e+00 : f32
    %187 = vector.broadcast %cst_46 : f32 to vector<8x128xf32>
    %188 = arith.subf %187, %166 : vector<8x128xf32>
    %189 = arith.mulf %188, %166 : vector<8x128xf32>
    %190 = math.exp %189 : vector<8x128xf32>
    %191 = arith.mulf %186, %190 : vector<8x128xf32>
    %cst_47 = arith.constant 1.000000e+00 : f32
    %192 = vector.broadcast %cst_47 : f32 to vector<8x128xf32>
    %193 = arith.subf %192, %191 : vector<8x128xf32>
    %cst_48 = arith.constant 0.000000e+00 : f32
    %194 = vector.broadcast %cst_48 : f32 to vector<8x128xf32>
    %195 = arith.cmpf olt, %165, %194 : vector<8x128xf32>
    %cst_49 = arith.constant 0.000000e+00 : f32
    %196 = vector.broadcast %cst_49 : f32 to vector<8x128xf32>
    %197 = arith.subf %196, %193 : vector<8x128xf32>
    %198 = arith.select %195, %197, %193 : vector<8x128xi1>, vector<8x128xf32>
    %cst_50 = arith.constant 1.000000e+00 : f32
    %199 = vector.broadcast %cst_50 : f32 to vector<8x128xf32>
    %200 = arith.addf %199, %198 : vector<8x128xf32>
    %201 = arith.mulf %163, %200 : vector<8x128xf32>
    %202 = arith.truncf %201 : vector<8x128xf32> to vector<8x128xbf16>
    %c0_51 = arith.constant 0 : index
    %c0_52 = arith.constant 0 : index
    %203 = vector.load %arg7[%c0_51, %c0_52] : memref<128x32xbf16, #tpu.memory_space<vmem>>, vector<128x32xbf16>
    %cst_53 = arith.constant dense<0.000000e+00> : vector<8x32xf32>
    %204 = tpu.matmul %202, %203, %cst_53 {dimension_numbers = #tpu.dot_dimension_numbers<[1], [0], [0], [1], [0, 0, 1, 1], [], []>} : vector<8x128xbf16>, vector<128x32xbf16>, vector<8x32xf32> -> vector<8x32xf32>
    %205 = vector.shape_cast %20 : vector<32xf32> to vector<1x32xf32>
    %206 = vector.broadcast %205 : vector<1x32xf32> to vector<8x32xf32>
    %207 = arith.addf %204, %206 : vector<8x32xf32>
    %cst_54 = arith.constant 5.000000e-01 : f32
    %208 = vector.broadcast %cst_54 : f32 to vector<8x32xf32>
    %209 = arith.mulf %208, %207 : vector<8x32xf32>
    %cst_55 = arith.constant 0.707106769 : f32
    %210 = vector.broadcast %cst_55 : f32 to vector<8x32xf32>
    %211 = arith.mulf %207, %210 : vector<8x32xf32>
    %212 = math.absf %211 : vector<8x32xf32>
    %cst_56 = arith.constant 0.327591091 : f32
    %213 = vector.broadcast %cst_56 : f32 to vector<8x32xf32>
    %214 = arith.mulf %213, %212 : vector<8x32xf32>
    %cst_57 = arith.constant 1.000000e+00 : f32
    %215 = vector.broadcast %cst_57 : f32 to vector<8x32xf32>
    %216 = arith.addf %215, %214 : vector<8x32xf32>
    %cst_58 = arith.constant 1.000000e+00 : f32
    %217 = vector.broadcast %cst_58 : f32 to vector<8x32xf32>
    %218 = arith.divf %217, %216 : vector<8x32xf32>
    %cst_59 = arith.constant 1.06140542 : f32
    %219 = vector.broadcast %cst_59 : f32 to vector<8x32xf32>
    %220 = arith.mulf %218, %219 : vector<8x32xf32>
    %cst_60 = arith.constant -1.45315206 : f32
    %221 = vector.broadcast %cst_60 : f32 to vector<8x32xf32>
    %222 = arith.addf %221, %220 : vector<8x32xf32>
    %223 = arith.mulf %218, %222 : vector<8x32xf32>
    %cst_61 = arith.constant 1.42141378 : f32
    %224 = vector.broadcast %cst_61 : f32 to vector<8x32xf32>
    %225 = arith.addf %224, %223 : vector<8x32xf32>
    %226 = arith.mulf %218, %225 : vector<8x32xf32>
    %cst_62 = arith.constant -0.284496725 : f32
    %227 = vector.broadcast %cst_62 : f32 to vector<8x32xf32>
    %228 = arith.addf %227, %226 : vector<8x32xf32>
    %229 = arith.mulf %218, %228 : vector<8x32xf32>
    %cst_63 = arith.constant 0.254829586 : f32
    %230 = vector.broadcast %cst_63 : f32 to vector<8x32xf32>
    %231 = arith.addf %230, %229 : vector<8x32xf32>
    %232 = arith.mulf %218, %231 : vector<8x32xf32>
    %cst_64 = arith.constant 0.000000e+00 : f32
    %233 = vector.broadcast %cst_64 : f32 to vector<8x32xf32>
    %234 = arith.subf %233, %212 : vector<8x32xf32>
    %235 = arith.mulf %234, %212 : vector<8x32xf32>
    %236 = math.exp %235 : vector<8x32xf32>
    %237 = arith.mulf %232, %236 : vector<8x32xf32>
    %cst_65 = arith.constant 1.000000e+00 : f32
    %238 = vector.broadcast %cst_65 : f32 to vector<8x32xf32>
    %239 = arith.subf %238, %237 : vector<8x32xf32>
    %cst_66 = arith.constant 0.000000e+00 : f32
    %240 = vector.broadcast %cst_66 : f32 to vector<8x32xf32>
    %241 = arith.cmpf olt, %211, %240 : vector<8x32xf32>
    %cst_67 = arith.constant 0.000000e+00 : f32
    %242 = vector.broadcast %cst_67 : f32 to vector<8x32xf32>
    %243 = arith.subf %242, %239 : vector<8x32xf32>
    %244 = arith.select %241, %243, %239 : vector<8x32xi1>, vector<8x32xf32>
    %cst_68 = arith.constant 1.000000e+00 : f32
    %245 = vector.broadcast %cst_68 : f32 to vector<8x32xf32>
    %246 = arith.addf %245, %244 : vector<8x32xf32>
    %247 = arith.mulf %209, %246 : vector<8x32xf32>
    %248 = arith.addf %129, %247 : vector<8x32xf32>
    %249 = vector.shape_cast %248 : vector<8x32xf32> to vector<1x8x32xf32>
    %c0_69 = arith.constant 0 : index
    %c0_70 = arith.constant 0 : index
    %c0_71 = arith.constant 0 : index
    %250 = vector.load %arg9[%c0_69, %c0_70, %c0_71] : memref<1x8x32xf32, #tpu.memory_space<vmem>>, vector<1x8x32xf32>
    tpu.vector_store %arg9[%c0_69, %c0_70, %c0_71], %249 {strides = array<i32>} : memref<1x8x32xf32, #tpu.memory_space<vmem>>, vector<1x8x32xf32>,
    return
  }
  func.func @transform_0(%arg0: i32) -> (i32, i32, i32) {
    %c0_i32 = arith.constant 0 : i32
    %c0_i32_0 = arith.constant 0 : i32
    %c0_i32_1 = arith.constant 0 : i32
    return %arg0, %c0_i32, %c0_i32_0 : i32, i32, i32
  }
  func.func @transform_1(%arg0: i32) -> (i32, i32) {
    %c0_i32 = arith.constant 0 : i32
    %c0_i32_0 = arith.constant 0 : i32
    %c0_i32_1 = arith.constant 0 : i32
    return %c0_i32, %c0_i32_0 : i32, i32
  }
  func.func @transform_2(%arg0: i32) -> (i32, i32) {
    %c0_i32 = arith.constant 0 : i32
    %c0_i32_0 = arith.constant 0 : i32
    %c0_i32_1 = arith.constant 0 : i32
    return %c0_i32, %c0_i32_0 : i32, i32
  }
  func.func @transform_3(%arg0: i32) -> (i32, i32) {
    %c0_i32 = arith.constant 0 : i32
    %c0_i32_0 = arith.constant 0 : i32
    %c0_i32_1 = arith.constant 0 : i32
    return %c0_i32, %c0_i32_0 : i32, i32
  }
  func.func @transform_4(%arg0: i32) -> (i32, i32) {
    %c0_i32 = arith.constant 0 : i32
    %c0_i32_0 = arith.constant 0 : i32
    %c0_i32_1 = arith.constant 0 : i32
    return %c0_i32, %c0_i32_0 : i32, i32
  }
  func.func @transform_5(%arg0: i32) -> (i32, i32) {
    %c0_i32 = arith.constant 0 : i32
    %c0_i32_0 = arith.constant 0 : i32
    %c0_i32_1 = arith.constant 0 : i32
    return %c0_i32, %c0_i32_0 : i32, i32
  }
  func.func @transform_6(%arg0: i32) -> (i32, i32) {
    %c0_i32 = arith.constant 0 : i32
    %c0_i32_0 = arith.constant 0 : i32
    %c0_i32_1 = arith.constant 0 : i32
    return %c0_i32, %c0_i32_0 : i32, i32
  }
  func.func @transform_7(%arg0: i32) -> (i32, i32) {
    %c0_i32 = arith.constant 0 : i32
    %c0_i32_0 = arith.constant 0 : i32
    %c0_i32_1 = arith.constant 0 : i32
    return %c0_i32, %c0_i32_0 : i32, i32
  }
  func.func @transform_8(%arg0: i32) -> (i32, i32, i32) {
    %c0_i32 = arith.constant 0 : i32
    %c0_i32_0 = arith.constant 0 : i32
    %c0_i32_1 = arith.constant 0 : i32
    return %arg0, %c0_i32, %c0_i32_0 : i32, i32, i32
  }
}

</mosaic_0001>

<llo_original>
// kernel: tpu_custom_call.1
$region0: #{tpu_custom_call.1}
  #allocation0 [shape = 'u32[]', space=smem, size = 0x4, offset = 0x4, fixed_abs, tag = 'smem constant byte address 0x4 - core index']
  #allocation1 [shape = 'u32[144,128]{1,0:T(1,128)}', space=vmem, size = 0x12000, scoped, tag = 'internal scratch']
  %s0 = inlined_call_operand.hbm [shape: f32[2,8,32], index: 0, kind: input, shape index: {}]
  %s1 = inlined_call_operand.hbm [shape: bf16[32,64], index: 1, kind: input, shape index: {}]
  %s2 = inlined_call_operand.vmem [shape: bf16[64,192], index: 2, kind: input, shape index: {}]
  %s3 = inlined_call_operand.vmem [shape: bf16[64,64], index: 3, kind: input, shape index: {}]
  %s4 = inlined_call_operand.vmem [shape: bf16[64,32], index: 4, kind: input, shape index: {}]
  %s5 = inlined_call_operand.hbm [shape: bf16[32,128], index: 5, kind: input, shape index: {}]
  %s6 = inlined_call_operand.vmem [shape: bf16[128,32], index: 6, kind: input, shape index: {}]
  %s7 = inlined_call_operand.vmem [shape: f32[10,192], index: 7, kind: input, shape index: {}]
  %s8 = inlined_call_operand.hbm [shape: f32[2,8,32], index: 8, kind: output, shape index: {}]
  %s9 = sld [smem:[#allocation0]]
  $region77: #{tpu_custom_call.1} parent=0
    _
  %s11 = ssub.s32 1, %s9
  %s12 = scalar_select 0, %s11, %s9
  $region1: #{tpu_custom_call.1} parent=0
    #allocation2 [shape = 'u8[8192]{0}', space=vmem, size = 0x2000, scoped, tag = 'input window, operand 0']
    #allocation3 [shape = 's32[2]{0}', space=sflag, size = 0x8, scoped, tag = 'scoped memory for tpu_custom_call.1']
    #allocation4 [shape = 's32[2]{0}', space=sflag, size = 0x8, scoped, tag = 'scoped memory for tpu_custom_call.1']
    #allocation5 [shape = 'u8[8192]{0}', space=vmem, size = 0x2000, scoped, tag = 'input window, operand 1, single buffered']
    #allocation6 [shape = 's32[1]{0}', space=sflag, size = 0x4, scoped, tag = 'scoped memory for tpu_custom_call.1']
    #allocation7 [shape = 'u8[8192]{0}', space=vmem, size = 0x2000, scoped, tag = 'input window, operand 5, single buffered']
    #allocation8 [shape = 'u8[8192]{0}', space=vmem, size = 0x2000, scoped, tag = 'output window, operand 0']
    %13 = vsyncpa [#allocation3], 0
    %s14 = scalar_lea.sflag [#allocation3], 1
    %15 = vsyncpa %s14, 0
    %16 = vsyncpa [#allocation6], 0
    %17 = vsyncpa [#allocation4], 0
    %s18 = scalar_lea.sflag [#allocation4], 1
    %19 = vsyncpa %s18, 0
    loop: start=0, step=1, limit=4
    $region2: #{tpu_custom_call.1} parent=1 // loop_pre_header
      _
    $region3: #{tpu_custom_call.1} parent=1 // loop_header
      %s21 = sphi 0, %s25
      %p22 = scmp.ge.s32.totalorder %s21, 4
      %s31 = sphi 0, %s33
      %s34 = sphi 0, %s31
      %s35 = sphi 0, %s34
      %s51 = sphi 0, %s35
      %s55 = sphi 0, %s55
      %s57 = sphi 0, %s55
      %s58 = sphi 0, %s57
      %s72 = sphi 0, %s58
      %s76 = sphi 0, %s76
      %s78 = sphi 0, %s76
      %s79 = sphi 0, %s78
      %s93 = sphi 0, %s79
      %s97 = sphi 0, %s97
      %s99 = sphi 0, %s97
      %s100 = sphi 0, %s99
      %s114 = sphi 0, %s100
      %s118 = sphi 0, %s118
      %s120 = sphi 0, %s118
      %s121 = sphi 0, %s120
      %s135 = sphi 0, %s121
      %s139 = sphi 0, %s139
      %s141 = sphi 0, %s139
      %s142 = sphi 0, %s141
      %s156 = sphi 0, %s142
      %s160 = sphi 0, %s160
      %s162 = sphi 0, %s160
      %s163 = sphi 0, %s162
      %s177 = sphi 0, %s163
      %s181 = sphi 0, %s181
      %s183 = sphi 0, %s181
      %s184 = sphi 0, %s183
      %s198 = sphi 0, %s184
      %s204 = sphi 0, %s206
      %s207 = sphi 0, %s204
      %s208 = sphi 0, %s207
      %s224 = sphi 0, %s208
    $region4: #{tpu_custom_call.1} parent=1 // loop_header_branch
      %24 = sbr.rel (%p22) target = $region8
    $region5: #{tpu_custom_call.1} parent=1 // loop_body
      %s26 = ssub.s32 %s21, 1
      %s27 = ssub.s32 %s21, 2
      %s28 = sadd.s32 %s21, 1
      %s29 = ssub.s32 %s21, %s28
      %p30 = scmp.eq.s32.totalorder %s29, 0
      %s32 = sadd.s32 %s31, 1
      %s33 = scalar_select %p30, %s31, %s32
      %p36 = pneg %p30
      %p37 = scmp.eq.s32.totalorder %s21, 1
      %p38 = por %p36, %p37
      %p39 = scmp.ne.s32.totalorder %s31, %s34
      %p40 = scmp.eq.s32.totalorder %s21, 0
      %p41 = por %p39, %p40
      %p42 = scmp.ne.s32.totalorder %s31, %s34
      %p43 = scmp.eq.s32.totalorder %s26, 1
      %p44 = por %p42, %p43
      %p45 = scmp.ne.s32.totalorder %s34, %s35
      %p46 = scmp.eq.s32.totalorder %s26, 0
      %p47 = por %p45, %p46
      %p48 = scmp.ne.s32.totalorder %s34, %s35
      %p49 = scmp.eq.s32.totalorder %s27, 1
      %p50 = por %p48, %p49
      %p52 = scmp.ne.s32.totalorder %s35, %s51
      %p53 = scmp.eq.s32.totalorder %s27, 0
      %p54 = por %p52, %p53
      %s56 = sadd.s32 %s55, 1
      %p59 = scmp.eq.s32.totalorder %s21, 1
      %p60 = scmp.ne.s32.totalorder %s55, %s57
      %p61 = scmp.eq.s32.totalorder %s21, 0
      %p62 = por %p60, %p61
      %p63 = scmp.ne.s32.totalorder %s55, %s57
      %p64 = scmp.eq.s32.totalorder %s26, 1
      %p65 = por %p63, %p64
      %p66 = scmp.ne.s32.totalorder %s57, %s58
      %p67 = scmp.eq.s32.totalorder %s26, 0
      %p68 = por %p66, %p67
      %p69 = scmp.ne.s32.totalorder %s57, %s58
      %p70 = scmp.eq.s32.totalorder %s27, 1
      %p71 = por %p69, %p70
      %p73 = scmp.ne.s32.totalorder %s58, %s72
      %p74 = scmp.eq.s32.totalorder %s27, 0
      %p75 = por %p73, %p74
      %s77 = sadd.s32 %s76, 1
      %p80 = scmp.eq.s32.totalorder %s21, 1
      %p81 = scmp.ne.s32.totalorder %s76, %s78
      %p82 = scmp.eq.s32.totalorder %s21, 0
      %p83 = por %p81, %p82
      %p84 = scmp.ne.s32.totalorder %s76, %s78
      %p85 = scmp.eq.s32.totalorder %s26, 1
      %p86 = por %p84, %p85
      %p87 = scmp.ne.s32.totalorder %s78, %s79
      %p88 = scmp.eq.s32.totalorder %s26, 0
      %p89 = por %p87, %p88
      %p90 = scmp.ne.s32.totalorder %s78, %s79
      %p91 = scmp.eq.s32.totalorder %s27, 1
      %p92 = por %p90, %p91
      %p94 = scmp.ne.s32.totalorder %s79, %s93
      %p95 = scmp.eq.s32.totalorder %s27, 0
      %p96 = por %p94, %p95
      %s98 = sadd.s32 %s97, 1
      %p101 = scmp.eq.s32.totalorder %s21, 1
      %p102 = scmp.ne.s32.totalorder %s97, %s99
      %p103 = scmp.eq.s32.totalorder %s21, 0
      %p104 = por %p102, %p103
      %p105 = scmp.ne.s32.totalorder %s97, %s99
      %p106 = scmp.eq.s32.totalorder %s26, 1
      %p107 = por %p105, %p106
      %p108 = scmp.ne.s32.totalorder %s99, %s100
      %p109 = scmp.eq.s32.totalorder %s26, 0
      %p110 = por %p108, %p109
      %p111 = scmp.ne.s32.totalorder %s99, %s100
      %p112 = scmp.eq.s32.totalorder %s27, 1
      %p113 = por %p111, %p112
      %p115 = scmp.ne.s32.totalorder %s100, %s114
      %p116 = scmp.eq.s32.totalorder %s27, 0
      %p117 = por %p115, %p116
      %s119 = sadd.s32 %s118, 1
      %p122 = scmp.eq.s32.totalorder %s21, 1
      %p123 = scmp.ne.s32.totalorder %s118, %s120
      %p124 = scmp.eq.s32.totalorder %s21, 0
      %p125 = por %p123, %p124
      %p126 = scmp.ne.s32.totalorder %s118, %s120
      %p127 = scmp.eq.s32.totalorder %s26, 1
      %p128 = por %p126, %p127
      %p129 = scmp.ne.s32.totalorder %s120, %s121
      %p130 = scmp.eq.s32.totalorder %s26, 0
      %p131 = por %p129, %p130
      %p132 = scmp.ne.s32.totalorder %s120, %s121
      %p133 = scmp.eq.s32.totalorder %s27, 1
      %p134 = por %p132, %p133
      %p136 = scmp.ne.s32.totalorder %s121, %s135
      %p137 = scmp.eq.s32.totalorder %s27, 0
      %p138 = por %p136, %p137
      %s140 = sadd.s32 %s139, 1
      %p143 = scmp.eq.s32.totalorder %s21, 1
      %p144 = scmp.ne.s32.totalorder %s139, %s141
      %p145 = scmp.eq.s32.totalorder %s21, 0
      %p146 = por %p144, %p145
      %p147 = scmp.ne.s32.totalorder %s139, %s141
      %p148 = scmp.eq.s32.totalorder %s26, 1
      %p149 = por %p147, %p148
      %p150 = scmp.ne.s32.totalorder %s141, %s142
      %p151 = scmp.eq.s32.totalorder %s26, 0
      %p152 = por %p150, %p151
      %p153 = scmp.ne.s32.totalorder %s141, %s142
      %p154 = scmp.eq.s32.totalorder %s27, 1
      %p155 = por %p153, %p154
      %p157 = scmp.ne.s32.totalorder %s142, %s156
      %p158 = scmp.eq.s32.totalorder %s27, 0
      %p159 = por %p157, %p158
      %s161 = sadd.s32 %s160, 1
      %p164 = scmp.eq.s32.totalorder %s21, 1
      %p165 = scmp.ne.s32.totalorder %s160, %s162
      %p166 = scmp.eq.s32.totalorder %s21, 0
      %p167 = por %p165, %p166
      %p168 = scmp.ne.s32.totalorder %s160, %s162
      %p169 = scmp.eq.s32.totalorder %s26, 1
      %p170 = por %p168, %p169
      %p171 = scmp.ne.s32.totalorder %s162, %s163
      %p172 = scmp.eq.s32.totalorder %s26, 0
      %p173 = por %p171, %p172
      %p174 = scmp.ne.s32.totalorder %s162, %s163
      %p175 = scmp.eq.s32.totalorder %s27, 1
      %p176 = por %p174, %p175
      %p178 = scmp.ne.s32.totalorder %s163, %s177
      %p179 = scmp.eq.s32.totalorder %s27, 0
      %p180 = por %p178, %p179
      %s182 = sadd.s32 %s181, 1
      %p185 = scmp.eq.s32.totalorder %s21, 1
      %p186 = scmp.ne.s32.totalorder %s181, %s183
      %p187 = scmp.eq.s32.totalorder %s21, 0
      %p188 = por %p186, %p187
      %p189 = scmp.ne.s32.totalorder %s181, %s183
      %p190 = scmp.eq.s32.totalorder %s26, 1
      %p191 = por %p189, %p190
      %p192 = scmp.ne.s32.totalorder %s183, %s184
      %p193 = scmp.eq.s32.totalorder %s26, 0
      %p194 = por %p192, %p193
      %p195 = scmp.ne.s32.totalorder %s183, %s184
      %p196 = scmp.eq.s32.totalorder %s27, 1
      %p197 = por %p195, %p196
      %p199 = scmp.ne.s32.totalorder %s184, %s198
      %p200 = scmp.eq.s32.totalorder %s27, 0
      %p201 = por %p199, %p200
      %s202 = ssub.s32 %s21, %s28
      %p203 = scmp.eq.s32.totalorder %s202, 0
      %s205 = sadd.s32 %s204, 1
      %s206 = scalar_select %p203, %s204, %s205
      %p209 = pneg %p203
      %p210 = scmp.eq.s32.totalorder %s21, 1
      %p211 = por %p209, %p210
      %p212 = scmp.ne.s32.totalorder %s204, %s207
      %p213 = scmp.eq.s32.totalorder %s21, 0
      %p214 = por %p212, %p213
      %p215 = scmp.ne.s32.totalorder %s204, %s207
      %p216 = scmp.eq.s32.totalorder %s26, 1
      %p217 = por %p215, %p216
      %p218 = scmp.ne.s32.totalorder %s207, %s208
      %p219 = scmp.eq.s32.totalorder %s26, 0
      %p220 = por %p218, %p219
      %p221 = scmp.ne.s32.totalorder %s207, %s208
      %p222 = scmp.eq.s32.totalorder %s27, 1
      %p223 = por %p221, %p222
      %p225 = scmp.ne.s32.totalorder %s208, %s224
      %p226 = scmp.eq.s32.totalorder %s27, 0
      %p227 = por %p225, %p226
      %p228 = scmp.le.s32.totalorder 1, %s21
      %p229 = scmp.lt.s32.totalorder %s21, 3
      %p230 = pnand %p228, %p229
      %p231 = pneg %p230
      // Predicated region
      $region9: #{tpu_custom_call.1} parent=5 // pred_check
        _
      $region10: #{tpu_custom_call.1} parent=5 // pred_check_branch
        %233 = sbr.rel (%p230) target = $region12
      $region11: #{tpu_custom_call.1} parent=5 // pred_region
        %s234 = ssub.s32 %s21, 1
        // Predicated region
        $region13: #{tpu_custom_call.1} parent=11 // pred_check
          %p235 = pneg %p68
        $region14: #{tpu_custom_call.1} parent=11 // pred_check_branch
          %237 = sbr.rel (%p235) target = $region16
        $region15: #{tpu_custom_call.1} parent=11 // pred_region
          %s239 = ssub.s32 256, 256
          %240 = vsyncadd [#allocation6], %s239
          %s241 = sshll.u32 [#allocation5], 4
          %s242 = int_to_ptr.vmem [resolvable:$true] %s241
          %247 = dma.hbm_to_vmem [thread:$0]  %s1, 256, %s242, [#allocation6], 64, 64, 4
        $region16: #{tpu_custom_call.1} parent=11 // pred_fallthru
          _
        // Predicated region
        $region17: #{tpu_custom_call.1} parent=11 // pred_check
          %p248 = pneg %p89
        $region18: #{tpu_custom_call.1} parent=11 // pred_check_branch
          %250 = sbr.rel (%p248) target = $region20
        $region19: #{tpu_custom_call.1} parent=11 // pred_region
          _
        $region20: #{tpu_custom_call.1} parent=11 // pred_fallthru
          _
        // Predicated region
        $region21: #{tpu_custom_call.1} parent=11 // pred_check
          %p251 = pneg %p110
        $region22: #{tpu_custom_call.1} parent=11 // pred_check_branch
          %253 = sbr.rel (%p251) target = $region24
        $region23: #{tpu_custom_call.1} parent=11 // pred_region
          _
        $region24: #{tpu_custom_call.1} parent=11 // pred_fallthru
          _
        // Predicated region
        $region25: #{tpu_custom_call.1} parent=11 // pred_check
          %p254 = pneg %p131
        $region26: #{tpu_custom_call.1} parent=11 // pred_check_branch
          %256 = sbr.rel (%p254) target = $region28
        $region27: #{tpu_custom_call.1} parent=11 // pred_region
          _
        $region28: #{tpu_custom_call.1} parent=11 // pred_fallthru
          _
        // Predicated region
        $region29: #{tpu_custom_call.1} parent=11 // pred_check
          %p257 = pneg %p152
        $region30: #{tpu_custom_call.1} parent=11 // pred_check_branch
          %259 = sbr.rel (%p257) target = $region32
        $region31: #{tpu_custom_call.1} parent=11 // pred_region
          %s261 = ssub.s32 256, 256
          %262 = vsyncadd [#allocation6], %s261
          %s263 = sshll.u32 [#allocation7], 4
          %s264 = int_to_ptr.vmem [resolvable:$true] %s263
          %269 = dma.hbm_to_vmem [thread:$0]  %s5, 256, %s264, [#allocation6], 64, 64, 4
        $region32: #{tpu_custom_call.1} parent=11 // pred_fallthru
          _
        // Predicated region
        $region33: #{tpu_custom_call.1} parent=11 // pred_check
          %p270 = pneg %p173
        $region34: #{tpu_custom_call.1} parent=11 // pred_check_branch
          %272 = sbr.rel (%p270) target = $region36
        $region35: #{tpu_custom_call.1} parent=11 // pred_region
          _
        $region36: #{tpu_custom_call.1} parent=11 // pred_fallthru
          _
        // Predicated region
        $region37: #{tpu_custom_call.1} parent=11 // pred_check
          %p273 = pneg %p194
        $region38: #{tpu_custom_call.1} parent=11 // pred_check_branch
          %275 = sbr.rel (%p273) target = $region40
        $region39: #{tpu_custom_call.1} parent=11 // pred_region
          _
        $region40: #{tpu_custom_call.1} parent=11 // pred_fallthru
          _
      $region12: #{tpu_custom_call.1} parent=5 // pred_fallthru
        _
      %p276 = scmp.lt.s32.totalorder %s21, 2
      // Predicated region
      $region41: #{tpu_custom_call.1} parent=5 // pred_check
        %p277 = pneg %p276
      $region42: #{tpu_custom_call.1} parent=5 // pred_check_branch
        %279 = sbr.rel (%p277) target = $region44
      $region43: #{tpu_custom_call.1} parent=5 // pred_region
        // Predicated region
        $region45: #{tpu_custom_call.1} parent=43 // pred_check
          %p280 = pneg %p41
        $region46: #{tpu_custom_call.1} parent=43 // pred_check_branch
          %282 = sbr.rel (%p280) target = $region48
        $region47: #{tpu_custom_call.1} parent=43 // pred_region
          %s283 = sand.u32 %s31, 1
          %s284 = scalar_lea.sflag [#allocation3], %s283
          %s285 = sand.u32 %s31, 1
          %s286 = smul.addr %s285, 8
          %s287 = scalar_lea.vmem [#allocation2], %s286
          %s289 = ssub.s32 128, 128
          %290 = vsyncadd %s284, %s289
          %s291 = smul.addr %s21, 128
          %s292 = scalar_lea.hbm %s0, %s291
          %s294 = sshll.u32 %s287, 4
          %s295 = int_to_ptr.vmem [resolvable:$true] %s294
          %297 = dma.hbm_to_vmem [thread:$0]  %s292, 128, %s295, %s284
        $region48: #{tpu_custom_call.1} parent=43 // pred_fallthru
          _
      $region44: #{tpu_custom_call.1} parent=5 // pred_fallthru
        _
      %p298 = scmp.le.s32.totalorder 1, %s21
      %p299 = scmp.lt.s32.totalorder %s21, 3
      %p300 = pnand %p298, %p299
      %p301 = pneg %p300
      // Predicated region
      $region49: #{tpu_custom_call.1} parent=5 // pred_check
        _
      $region50: #{tpu_custom_call.1} parent=5 // pred_check_branch
        %303 = sbr.rel (%p300) target = $region52
      $region51: #{tpu_custom_call.1} parent=5 // pred_region
        %s304 = ssub.s32 %s21, 1
        %s305 = sand.u32 %s34, 1
        %s306 = scalar_lea.sflag [#allocation3], %s305
        %s307 = sand.u32 %s34, 1
        %s308 = smul.addr %s307, 8
        %s309 = scalar_lea.vmem [#allocation2], %s308
        // Predicated region
        $region53: #{tpu_custom_call.1} parent=51 // pred_check
          %p310 = pneg %p47
        $region54: #{tpu_custom_call.1} parent=51 // pred_check_branch
          %312 = sbr.rel (%p310) target = $region56
        $region55: #{tpu_custom_call.1} parent=51 // pred_region
          %313 = dma.done %s306, 128
        $region56: #{tpu_custom_call.1} parent=51 // pred_fallthru
          _
        // Predicated region
        $region57: #{tpu_custom_call.1} parent=51 // pred_check
          %p314 = pneg %p68
        $region58: #{tpu_custom_call.1} parent=51 // pred_check_branch
          %316 = sbr.rel (%p314) target = $region60
        $region59: #{tpu_custom_call.1} parent=51 // pred_region
          %317 = dma.done [#allocation6], 256
        $region60: #{tpu_custom_call.1} parent=51 // pred_fallthru
          _
        // Predicated region
        $region61: #{tpu_custom_call.1} parent=51 // pred_check
          %p318 = pneg %p152
        $region62: #{tpu_custom_call.1} parent=51 // pred_check_branch
          %320 = sbr.rel (%p318) target = $region64
        $region63: #{tpu_custom_call.1} parent=51 // pred_region
          %321 = dma.done [#allocation6], 256
        $region64: #{tpu_custom_call.1} parent=51 // pred_fallthru
          _
        %s322 = sand.u32 %s34, 1
        %s323 = scalar_lea.sflag [#allocation3], %s322
        %s324 = sand.u32 %s34, 1
        %s325 = smul.addr %s324, 8
        %s326 = scalar_lea.vmem [#allocation2], %s325
        %p327 = pneg %p47
        %p328 = pneg %p44
        %p329 = pneg %p68
        %p330 = pneg %p65
        %p331 = pneg %p89
        %p332 = pneg %p86
        %p333 = pneg %p110
        %p334 = pneg %p107
        %p335 = pneg %p131
        %p336 = pneg %p128
        %p337 = pneg %p152
        %p338 = pneg %p149
        %p339 = pneg %p173
        %p340 = pneg %p170
        %p341 = pneg %p194
        %p342 = pneg %p191
        %p343 = pneg %p220
        %p344 = pneg %p217
        %s345 = sand.u32 %s207, 1
        %s346 = scalar_lea.sflag [#allocation4], %s345
        %s347 = sand.u32 %s207, 1
        %s348 = smul.addr %s347, 8
        %s349 = scalar_lea.vmem [#allocation8], %s348
        %v351 = vld [vmem:[%s7] sm:$0xff]
        %v352 = vld [vmem:[%s7 + $0x8] sm:$0xff]
        %v353 = vld [vmem:[%s7 + $0x10] sm:$0x3]
        %v354 = vld [vmem:[%s309] sm:$0xff]
        %vm355 = vcmask 261120
        %v356 = vsel %vm355, %v354, 0.0
        %357 = vadd.xlane.f32.xlu0 %v356
        %v358 = vpop.xlane.xlu0 %357
        %v359 = vrcp.pop 32.0
        %v360 = vmul.f32 %v358, %v359
        %v361 = vmul.f32 %v354, %v354
        %v362 = vsel %vm355, %v361, 0.0
        %363 = vadd.xlane.f32.xlu0 %v362
        %v364 = vpop.xlane.xlu0 %363
        %v365 = vmul.f32 %v364, %v359
        %v366 = vmul.f32 %v360, %v360
        %v367 = vsub.f32 %v365, %v366
        %v368 = vmax.f32 %v367, 0.0
        %v369 = vsub.f32 %v354, %v360
        %v370 = vadd.f32 %v368, 1e-06
        %v371 = vrsqrt.pop %v370
        %v372 = vmul.f32 %v369, %v371
        %v373 = vlaneseq
        %v374 = vshrl.u32 %v373, 7
        %v375 = vsub.s32 0, %v374
        %v376 = vrot.slane %v351, %v375
        %v377 = vmul.f32 %v372, %v376
        %v378 = vlaneseq
        %v379 = vshrl.u32 %v378, 7
        %v380 = vsub.s32 1, %v379
        %v381 = vrot.slane %v351, %v380
        %v382 = vadd.f32 %v377, %v381
        %v383 = vpack.c.bf16 %v382, %v382
        %v384 = vld [vmem:[#allocation5] sm:$0xf]
        %v385 = vld [vmem:[#allocation5 + $0x4] sm:$0xf]
        %v386 = vld [vmem:[#allocation5 + $0x8] sm:$0xf]
        %v387 = vld [vmem:[#allocation5 + $0xc] sm:$0xf]
        %v388 = vlaneseq
        %v389 = vshrl.u32 %v388, 7
        %v390 = vsub.s32 2, %v389
        %v391 = vrot.slane %v351, %v390
        %v396 = vunpack.c.l.b16 %v384
        %v397 = vunpack.c.l.b16 %v385
        %v398 = vunpack.c.l.b16 %v386
        %v399 = vunpack.c.l.b16 %v387
        %v400 = vpack.c.b16 %v397, %v396
        %v401 = vpack.c.b16 %v399, %v398
        %v405 = vsel %vm355, %v383, 0
        %407 = vmatprep.subr.bf16.mxu0 0
        %408 = vmatpush1.bf16.msra.mxu0 %v400
        %409 = vmatprep.subr.bf16.mxu0 0
        %410 = vmatpush1.bf16.msra.mxu0 %v401
        %411 = vmatprep.subr.bf16.mxu0 0
        %412 = vmatpush1.bf16.msra.mxu0 0
        %413 = vmatprep.subr.bf16.mxu0 0
        %414 = vmatpush1.bf16.msra.mxu0 0
        %415 = vmatprep.subr.bf16.mxu0 0
        %416 = vmatpush1.bf16.msra.mxu0 0
        %417 = vmatprep.subr.bf16.mxu0 0
        %418 = vmatpush1.bf16.msra.mxu0 0
        %419 = vmatprep.subr.bf16.mxu0 0
        %420 = vmatpush1.bf16.msra.mxu0 0
        %421 = vmatprep.subr.bf16.mxu0 0
        %422 = vmatpush1.bf16.msra.mxu0 0
        %423 = vmatprep.subr.bf16.mxu0 0
        %424 = vmatpush1.bf16.msra.mxu0 0
        %425 = vmatprep.subr.bf16.mxu0 0
        %426 = vmatpush1.bf16.msra.mxu0 0
        %427 = vmatprep.subr.bf16.mxu0 0
        %428 = vmatpush1.bf16.msra.mxu0 0
        %429 = vmatprep.subr.bf16.mxu0 0
        %430 = vmatpush1.bf16.msra.mxu0 0
        %431 = vmatprep.subr.bf16.mxu0 0
        %432 = vmatpush1.bf16.msra.mxu0 0
        %433 = vmatprep.subr.bf16.mxu0 0
        %434 = vmatpush1.bf16.msra.mxu0 0
        %435 = vmatprep.subr.bf16.mxu0 0
        %436 = vmatpush1.bf16.msra.mxu0 0
        %437 = vmatprep.subr.bf16.mxu0 0
        %438 = vmatpush1.bf16.msra.mxu0 0
        %439 = vmatprep.mubr.bf16.mxu0 0
        %440 = vmatmul.mubr.bf16.gmra.mrb[0].mxu0 %v405
        %v441 = vpop.f32.mrb[0].mxu0
        %v442 = vadd.f32 %v391, %v441
        %v443 = vpop.f32.mrb[0].mxu0
        %v444 = vpop.f32.mrb[0].mxu0
        %v445 = vpop.f32.mrb[0].mxu0
        %446 = vdwg.mxu0
        %v447 = vmax.f32 %v442, 0.0
        %v448 = vpack.c.bf16 %v447, %v447
        %v449 = vld [vmem:[%s2] sm:$0xff]
        %v450 = vld [vmem:[%s2 + $0x8] sm:$0xff]
        %v451 = vld [vmem:[%s2 + $0x10] sm:$0xff]
        %v452 = vld [vmem:[%s2 + $0x18] sm:$0xff]
        %v453 = vld [vmem:[%s2 + $0x20] sm:$0xff]
        %v454 = vld [vmem:[%s2 + $0x28] sm:$0xff]
        %v455 = vld [vmem:[%s2 + $0x30] sm:$0xff]
        %v456 = vld [vmem:[%s2 + $0x38] sm:$0xff]
        %v457 = vlaneseq
        %v458 = vshrl.u32 %v457, 7
        %v459 = vsub.s32 3, %v458
        %v460 = vrot.slane %v351, %v459
        %v461 = vlaneseq
        %v462 = vshrl.u32 %v461, 7
        %v463 = vsub.s32 3, %v462
        %v464 = vrot.slane %v352, %v463
        %v473 = vunpack.c.l.b16 %v449
        %v474 = vunpack.c.h.b16 %v449
        %v475 = vunpack.c.l.b16 %v450
        %v476 = vunpack.c.h.b16 %v450
        %v477 = vunpack.c.l.b16 %v451
        %v478 = vunpack.c.h.b16 %v451
        %v479 = vunpack.c.l.b16 %v452
        %v480 = vunpack.c.h.b16 %v452
        %v481 = vunpack.c.l.b16 %v453
        %v482 = vunpack.c.h.b16 %v453
        %v483 = vunpack.c.l.b16 %v454
        %v484 = vunpack.c.h.b16 %v454
        %v485 = vunpack.c.l.b16 %v455
        %v486 = vunpack.c.h.b16 %v455
        %v487 = vunpack.c.l.b16 %v456
        %v488 = vunpack.c.h.b16 %v456
        %v489 = vpack.c.b16 %v475, %v473
        %v490 = vpack.c.b16 %v476, %v474
        %v491 = vpack.c.b16 %v479, %v477
        %v492 = vpack.c.b16 %v480, %v478
        %v493 = vpack.c.b16 %v483, %v481
        %v494 = vpack.c.b16 %v484, %v482
        %v495 = vpack.c.b16 %v487, %v485
        %v496 = vpack.c.b16 %v488, %v486
        %vm505 = vcmask 523264
        %v507 = vsel %vm505, %v448, 0
        %509 = vmatprep.subr.bf16.mxu0 %v490
        %510 = vmatpush1.bf16.msra.mxu0 %v489
        %511 = vmatprep.subr.bf16.mxu0 %v492
        %512 = vmatpush1.bf16.msra.mxu0 %v491
        %513 = vmatprep.subr.bf16.mxu0 %v494
        %514 = vmatpush1.bf16.msra.mxu0 %v493
        %515 = vmatprep.subr.bf16.mxu0 %v496
        %516 = vmatpush1.bf16.msra.mxu0 %v495
        %517 = vmatprep.subr.bf16.mxu0 0
        %518 = vmatpush1.bf16.msra.mxu0 0
        %519 = vmatprep.subr.bf16.mxu0 0
        %520 = vmatpush1.bf16.msra.mxu0 0
        %521 = vmatprep.subr.bf16.mxu0 0
        %522 = vmatpush1.bf16.msra.mxu0 0
        %523 = vmatprep.subr.bf16.mxu0 0
        %524 = vmatpush1.bf16.msra.mxu0 0
        %525 = vmatprep.subr.bf16.mxu0 0
        %526 = vmatpush1.bf16.msra.mxu0 0
        %527 = vmatprep.subr.bf16.mxu0 0
        %528 = vmatpush1.bf16.msra.mxu0 0
        %529 = vmatprep.subr.bf16.mxu0 0
        %530 = vmatpush1.bf16.msra.mxu0 0
        %531 = vmatprep.subr.bf16.mxu0 0
        %532 = vmatpush1.bf16.msra.mxu0 0
        %533 = vmatprep.subr.bf16.mxu0 0
        %534 = vmatpush1.bf16.msra.mxu0 0
        %535 = vmatprep.subr.bf16.mxu0 0
        %536 = vmatpush1.bf16.msra.mxu0 0
        %537 = vmatprep.subr.bf16.mxu0 0
        %538 = vmatpush1.bf16.msra.mxu0 0
        %539 = vmatprep.subr.bf16.mxu0 0
        %540 = vmatpush1.bf16.msra.mxu0 0
        %541 = vmatprep.mubr.bf16.mxu0 0
        %542 = vmatmul.mubr.bf16.gmra.mrb[0].mxu0 %v507
        %v543 = vpop.f32.mrb[0].mxu0
        %v544 = vadd.f32 %v460, %v543
        %v545 = vpop.f32.mrb[0].mxu0
        %v546 = vadd.f32 %v464, %v545
        %v547 = vpop.f32.mrb[0].mxu0
        %v548 = vpop.f32.mrb[0].mxu0
        %549 = vdwg.mxu0
        %551 = vrot.lane.b32.xlu0 %v544, 112
        %v552 = vpop.permute.xlu0 %551
        %554 = vrot.lane.b32.xlu0 %v544, 96
        %v555 = vpop.permute.xlu0 %554
        %557 = vrot.lane.b32.xlu0 %v544, 80
        %v558 = vpop.permute.xlu0 %557
        %v560 = vpack.c.bf16 %v544, %v544
        %v561 = vpack.c.bf16 %v552, %v552
        %v562 = vpack.c.bf16 %v555, %v555
        %v563 = vpack.c.bf16 %v558, %v558
        %565 = vrot.lane.b32.xlu0 %v546, 112
        %v566 = vpop.permute.xlu0 %565
        %568 = vrot.lane.b32.xlu0 %v546, 96
        %v569 = vpop.permute.xlu0 %568
        %571 = vrot.lane.b32.xlu0 %v546, 80
        %v572 = vpop.permute.xlu0 %571
        %v574 = vpack.c.bf16 %v546, %v546
        %v575 = vpack.c.bf16 %v566, %v566
        %v576 = vpack.c.bf16 %v569, %v569
        %v577 = vpack.c.bf16 %v572, %v572
        %579 = vrot.lane.b32.xlu0 %v560, 64
        %v580 = vpop.permute.xlu0 %579
        %vm581 = vcmask 130048
        %v583 = vsel %vm581, %v560, 0
        %v586 = vsel %vm581, %v580, 0
        %588 = vmatprep.subr.bf16.mxu0 0
        %589 = vmatpush1.bf16.xpose.msra.mxu0 %v586
        %590 = vmatprep.subr.bf16.mxu0 0
        %591 = vmatpush1.bf16.xpose.msra.mxu0 0
        %592 = vmatprep.subr.bf16.mxu0 0
        %593 = vmatpush1.bf16.xpose.msra.mxu0 0
        %594 = vmatprep.subr.bf16.mxu0 0
        %595 = vmatpush1.bf16.xpose.msra.mxu0 0
        %596 = vmatprep.subr.bf16.mxu0 0
        %597 = vmatpush1.bf16.xpose.msra.mxu0 0
        %598 = vmatprep.subr.bf16.mxu0 0
        %599 = vmatpush1.bf16.xpose.msra.mxu0 0
        %600 = vmatprep.subr.bf16.mxu0 0
        %601 = vmatpush1.bf16.xpose.msra.mxu0 0
        %602 = vmatprep.subr.bf16.mxu0 0
        %603 = vmatpush1.bf16.xpose.msra.mxu0 0
        %604 = vmatprep.subr.bf16.mxu0 0
        %605 = vmatpush1.bf16.xpose.msra.mxu0 0
        %606 = vmatprep.subr.bf16.mxu0 0
        %607 = vmatpush1.bf16.xpose.msra.mxu0 0
        %608 = vmatprep.subr.bf16.mxu0 0
        %609 = vmatpush1.bf16.xpose.msra.mxu0 0
        %610 = vmatprep.subr.bf16.mxu0 0
        %611 = vmatpush1.bf16.xpose.msra.mxu0 0
        %612 = vmatprep.subr.bf16.mxu0 0
        %613 = vmatpush1.bf16.xpose.msra.mxu0 0
        %614 = vmatprep.subr.bf16.mxu0 0
        %615 = vmatpush1.bf16.xpose.msra.mxu0 0
        %616 = vmatprep.subr.bf16.mxu0 0
        %617 = vmatpush1.bf16.xpose.msra.mxu0 0
        %618 = vmatprep.subr.bf16.mxu0 0
        %619 = vmatpush1.bf16.xpose.msra.mxu0 0
        %620 = vmatprep.mubr.bf16.mxu0 0
        %621 = vmatmul.mubr.bf16.gmra.mrb[0].mxu0 %v583
        %v622 = vpop.f32.mrb[0].mxu0
        %v623 = vadd.f32 0.0, %v622
        %v624 = vpop.f32.mrb[0].mxu0
        %v625 = vpop.f32.mrb[0].mxu0
        %v626 = vpop.f32.mrb[0].mxu0
        %627 = vdwg.mxu0
        %629 = vrot.lane.b32.xlu0 %v561, 64
        %v630 = vpop.permute.xlu0 %629
        %v632 = vsel %vm581, %v561, 0
        %v635 = vsel %vm581, %v630, 0
        %637 = vmatprep.subr.bf16.mxu0 0
        %638 = vmatpush1.bf16.xpose.msra.mxu0 %v635
        %639 = vmatprep.subr.bf16.mxu0 0
        %640 = vmatpush1.bf16.xpose.msra.mxu0 0
        %641 = vmatprep.subr.bf16.mxu0 0
        %642 = vmatpush1.bf16.xpose.msra.mxu0 0
        %643 = vmatprep.subr.bf16.mxu0 0
        %644 = vmatpush1.bf16.xpose.msra.mxu0 0
        %645 = vmatprep.subr.bf16.mxu0 0
        %646 = vmatpush1.bf16.xpose.msra.mxu0 0
        %647 = vmatprep.subr.bf16.mxu0 0
        %648 = vmatpush1.bf16.xpose.msra.mxu0 0
        %649 = vmatprep.subr.bf16.mxu0 0
        %650 = vmatpush1.bf16.xpose.msra.mxu0 0
        %651 = vmatprep.subr.bf16.mxu0 0
        %652 = vmatpush1.bf16.xpose.msra.mxu0 0
        %653 = vmatprep.subr.bf16.mxu0 0
        %654 = vmatpush1.bf16.xpose.msra.mxu0 0
        %655 = vmatprep.subr.bf16.mxu0 0
        %656 = vmatpush1.bf16.xpose.msra.mxu0 0
        %657 = vmatprep.subr.bf16.mxu0 0
        %658 = vmatpush1.bf16.xpose.msra.mxu0 0
        %659 = vmatprep.subr.bf16.mxu0 0
        %660 = vmatpush1.bf16.xpose.msra.mxu0 0
        %661 = vmatprep.subr.bf16.mxu0 0
        %662 = vmatpush1.bf16.xpose.msra.mxu0 0
        %663 = vmatprep.subr.bf16.mxu0 0
        %664 = vmatpush1.bf16.xpose.msra.mxu0 0
        %665 = vmatprep.subr.bf16.mxu0 0
        %666 = vmatpush1.bf16.xpose.msra.mxu0 0
        %667 = vmatprep.subr.bf16.mxu0 0
        %668 = vmatpush1.bf16.xpose.msra.mxu0 0
        %669 = vmatprep.mubr.bf16.mxu0 0
        %670 = vmatmul.mubr.bf16.gmra.mrb[0].mxu0 %v632
        %v671 = vpop.f32.mrb[0].mxu0
        %v672 = vadd.f32 0.0, %v671
        %v673 = vpop.f32.mrb[0].mxu0
        %v674 = vpop.f32.mrb[0].mxu0
        %v675 = vpop.f32.mrb[0].mxu0
        %676 = vdwg.mxu0
        %678 = vrot.lane.b32.xlu0 %v562, 64
        %v679 = vpop.permute.xlu0 %678
        %v681 = vsel %vm581, %v562, 0
        %v684 = vsel %vm581, %v679, 0
        %686 = vmatprep.subr.bf16.mxu0 0
        %687 = vmatpush1.bf16.xpose.msra.mxu0 %v684
        %688 = vmatprep.subr.bf16.mxu0 0
        %689 = vmatpush1.bf16.xpose.msra.mxu0 0
        %690 = vmatprep.subr.bf16.mxu0 0
        %691 = vmatpush1.bf16.xpose.msra.mxu0 0
        %692 = vmatprep.subr.bf16.mxu0 0
        %693 = vmatpush1.bf16.xpose.msra.mxu0 0
        %694 = vmatprep.subr.bf16.mxu0 0
        %695 = vmatpush1.bf16.xpose.msra.mxu0 0
        %696 = vmatprep.subr.bf16.mxu0 0
        %697 = vmatpush1.bf16.xpose.msra.mxu0 0
        %698 = vmatprep.subr.bf16.mxu0 0
        %699 = vmatpush1.bf16.xpose.msra.mxu0 0
        %700 = vmatprep.subr.bf16.mxu0 0
        %701 = vmatpush1.bf16.xpose.msra.mxu0 0
        %702 = vmatprep.subr.bf16.mxu0 0
        %703 = vmatpush1.bf16.xpose.msra.mxu0 0
        %704 = vmatprep.subr.bf16.mxu0 0
        %705 = vmatpush1.bf16.xpose.msra.mxu0 0
        %706 = vmatprep.subr.bf16.mxu0 0
        %707 = vmatpush1.bf16.xpose.msra.mxu0 0
        %708 = vmatprep.subr.bf16.mxu0 0
        %709 = vmatpush1.bf16.xpose.msra.mxu0 0
        %710 = vmatprep.subr.bf16.mxu0 0
        %711 = vmatpush1.bf16.xpose.msra.mxu0 0
        %712 = vmatprep.subr.bf16.mxu0 0
        %713 = vmatpush1.bf16.xpose.msra.mxu0 0
        %714 = vmatprep.subr.bf16.mxu0 0
        %715 = vmatpush1.bf16.xpose.msra.mxu0 0
        %716 = vmatprep.subr.bf16.mxu0 0
        %717 = vmatpush1.bf16.xpose.msra.mxu0 0
        %718 = vmatprep.mubr.bf16.mxu0 0
        %719 = vmatmul.mubr.bf16.gmra.mrb[0].mxu0 %v681
        %v720 = vpop.f32.mrb[0].mxu0
        %v721 = vadd.f32 0.0, %v720
        %v722 = vpop.f32.mrb[0].mxu0
        %v723 = vpop.f32.mrb[0].mxu0
        %v724 = vpop.f32.mrb[0].mxu0
        %725 = vdwg.mxu0
        %727 = vrot.lane.b32.xlu0 %v563, 64
        %v728 = vpop.permute.xlu0 %727
        %v730 = vsel %vm581, %v563, 0
        %v733 = vsel %vm581, %v728, 0
        %735 = vmatprep.subr.bf16.mxu0 0
        %736 = vmatpush1.bf16.xpose.msra.mxu0 %v733
        %737 = vmatprep.subr.bf16.mxu0 0
        %738 = vmatpush1.bf16.xpose.msra.mxu0 0
        %739 = vmatprep.subr.bf16.mxu0 0
        %740 = vmatpush1.bf16.xpose.msra.mxu0 0
        %741 = vmatprep.subr.bf16.mxu0 0
        %742 = vmatpush1.bf16.xpose.msra.mxu0 0
        %743 = vmatprep.subr.bf16.mxu0 0
        %744 = vmatpush1.bf16.xpose.msra.mxu0 0
        %745 = vmatprep.subr.bf16.mxu0 0
        %746 = vmatpush1.bf16.xpose.msra.mxu0 0
        %747 = vmatprep.subr.bf16.mxu0 0
        %748 = vmatpush1.bf16.xpose.msra.mxu0 0
        %749 = vmatprep.subr.bf16.mxu0 0
        %750 = vmatpush1.bf16.xpose.msra.mxu0 0
        %751 = vmatprep.subr.bf16.mxu0 0
        %752 = vmatpush1.bf16.xpose.msra.mxu0 0
        %753 = vmatprep.subr.bf16.mxu0 0
        %754 = vmatpush1.bf16.xpose.msra.mxu0 0
        %755 = vmatprep.subr.bf16.mxu0 0
        %756 = vmatpush1.bf16.xpose.msra.mxu0 0
        %757 = vmatprep.subr.bf16.mxu0 0
        %758 = vmatpush1.bf16.xpose.msra.mxu0 0
        %759 = vmatprep.subr.bf16.mxu0 0
        %760 = vmatpush1.bf16.xpose.msra.mxu0 0
        %761 = vmatprep.subr.bf16.mxu0 0
        %762 = vmatpush1.bf16.xpose.msra.mxu0 0
        %763 = vmatprep.subr.bf16.mxu0 0
        %764 = vmatpush1.bf16.xpose.msra.mxu0 0
        %765 = vmatprep.subr.bf16.mxu0 0
        %766 = vmatpush1.bf16.xpose.msra.mxu0 0
        %767 = vmatprep.mubr.bf16.mxu0 0
        %768 = vmatmul.mubr.bf16.gmra.mrb[0].mxu0 %v730
        %v769 = vpop.f32.mrb[0].mxu0
        %v770 = vadd.f32 0.0, %v769
        %v771 = vpop.f32.mrb[0].mxu0
        %v772 = vpop.f32.mrb[0].mxu0
        %v773 = vpop.f32.mrb[0].mxu0
        %774 = vdwg.mxu0
        %vm775 = vcmask 64512
        %v776 = vsel %vm775, %v623, -inf
        %777 = vmax.xlane.f32.xlu0 %v776
        %v778 = vpop.xlane.xlu0 %777
        %v779 = vsel %vm775, %v672, -inf
        %780 = vmax.xlane.f32.xlu0 %v779
        %v781 = vpop.xlane.xlu0 %780
        %v782 = vsel %vm775, %v721, -inf
        %783 = vmax.xlane.f32.xlu0 %v782
        %v784 = vpop.xlane.xlu0 %783
        %v785 = vsel %vm775, %v770, -inf
        %786 = vmax.xlane.f32.xlu0 %v785
        %v787 = vpop.xlane.xlu0 %786
        %v788 = vsub.f32 %v623, %v778
        %v789 = vsub.f32 %v672, %v781
        %v790 = vsub.f32 %v721, %v784
        %v791 = vsub.f32 %v770, %v787
        %v792 = vmul.f32 %v788, 1.442695
        %v793 = vpow.pop %v792
        %v794 = vmul.f32 %v789, 1.442695
        %v795 = vpow.pop %v794
        %v796 = vmul.f32 %v790, 1.442695
        %v797 = vpow.pop %v796
        %v798 = vmul.f32 %v791, 1.442695
        %v799 = vpow.pop %v798
        %v800 = vsel %vm775, %v793, 0.0
        %801 = vadd.xlane.f32.xlu0 %v800
        %v802 = vpop.xlane.xlu0 %801
        %v803 = vsel %vm775, %v795, 0.0
        %804 = vadd.xlane.f32.xlu0 %v803
        %v805 = vpop.xlane.xlu0 %804
        %v806 = vsel %vm775, %v797, 0.0
        %807 = vadd.xlane.f32.xlu0 %v806
        %v808 = vpop.xlane.xlu0 %807
        %v809 = vsel %vm775, %v799, 0.0
        %810 = vadd.xlane.f32.xlu0 %v809
        %v811 = vpop.xlane.xlu0 %810
        %v812 = vrcp.pop %v802
        %v813 = vrcp.pop %v805
        %v814 = vrcp.pop %v808
        %v815 = vrcp.pop %v811
        %v816 = vmul.f32 %v793, %v812
        %v817 = vmul.f32 %v795, %v813
        %v818 = vmul.f32 %v797, %v814
        %v819 = vmul.f32 %v799, %v815
        %v820 = vpack.c.bf16 %v816, %v816
        %v821 = vpack.c.bf16 %v817, %v817
        %v822 = vpack.c.bf16 %v818, %v818
        %v823 = vpack.c.bf16 %v819, %v819
        %v825 = vsel %vm775, %v820, 0
        %vm827 = vcmask 1043456
        %v829 = vsel %vm827, %v574, 0
        %831 = vmatprep.subr.bf16.mxu0 0
        %832 = vmatpush1.bf16.msra.mxu0 %v829
        %833 = vmatprep.subr.bf16.mxu0 0
        %834 = vmatpush1.bf16.msra.mxu0 0
        %835 = vmatprep.subr.bf16.mxu0 0
        %836 = vmatpush1.bf16.msra.mxu0 0
        %837 = vmatprep.subr.bf16.mxu0 0
        %838 = vmatpush1.bf16.msra.mxu0 0
        %839 = vmatprep.subr.bf16.mxu0 0
        %840 = vmatpush1.bf16.msra.mxu0 0
        %841 = vmatprep.subr.bf16.mxu0 0
        %842 = vmatpush1.bf16.msra.mxu0 0
        %843 = vmatprep.subr.bf16.mxu0 0
        %844 = vmatpush1.bf16.msra.mxu0 0
        %845 = vmatprep.subr.bf16.mxu0 0
        %846 = vmatpush1.bf16.msra.mxu0 0
        %847 = vmatprep.subr.bf16.mxu0 0
        %848 = vmatpush1.bf16.msra.mxu0 0
        %849 = vmatprep.subr.bf16.mxu0 0
        %850 = vmatpush1.bf16.msra.mxu0 0
        %851 = vmatprep.subr.bf16.mxu0 0
        %852 = vmatpush1.bf16.msra.mxu0 0
        %853 = vmatprep.subr.bf16.mxu0 0
        %854 = vmatpush1.bf16.msra.mxu0 0
        %855 = vmatprep.subr.bf16.mxu0 0
        %856 = vmatpush1.bf16.msra.mxu0 0
        %857 = vmatprep.subr.bf16.mxu0 0
        %858 = vmatpush1.bf16.msra.mxu0 0
        %859 = vmatprep.subr.bf16.mxu0 0
        %860 = vmatpush1.bf16.msra.mxu0 0
        %861 = vmatprep.subr.bf16.mxu0 0
        %862 = vmatpush1.bf16.msra.mxu0 0
        %863 = vmatprep.mubr.bf16.mxu0 0
        %864 = vmatmul.mubr.bf16.gmra.mrb[0].mxu0 %v825
        %v865 = vpop.f32.mrb[0].mxu0
        %v866 = vadd.f32 0.0, %v865
        %v867 = vpop.f32.mrb[0].mxu0
        %v868 = vpop.f32.mrb[0].mxu0
        %v869 = vpop.f32.mrb[0].mxu0
        %870 = vdwg.mxu0
        %v872 = vsel %vm775, %v821, 0
        %v875 = vsel %vm827, %v575, 0
        %877 = vmatprep.subr.bf16.mxu0 0
        %878 = vmatpush1.bf16.msra.mxu0 %v875
        %879 = vmatprep.subr.bf16.mxu0 0
        %880 = vmatpush1.bf16.msra.mxu0 0
        %881 = vmatprep.subr.bf16.mxu0 0
        %882 = vmatpush1.bf16.msra.mxu0 0
        %883 = vmatprep.subr.bf16.mxu0 0
        %884 = vmatpush1.bf16.msra.mxu0 0
        %885 = vmatprep.subr.bf16.mxu0 0
        %886 = vmatpush1.bf16.msra.mxu0 0
        %887 = vmatprep.subr.bf16.mxu0 0
        %888 = vmatpush1.bf16.msra.mxu0 0
        %889 = vmatprep.subr.bf16.mxu0 0
        %890 = vmatpush1.bf16.msra.mxu0 0
        %891 = vmatprep.subr.bf16.mxu0 0
        %892 = vmatpush1.bf16.msra.mxu0 0
        %893 = vmatprep.subr.bf16.mxu0 0
        %894 = vmatpush1.bf16.msra.mxu0 0
        %895 = vmatprep.subr.bf16.mxu0 0
        %896 = vmatpush1.bf16.msra.mxu0 0
        %897 = vmatprep.subr.bf16.mxu0 0
        %898 = vmatpush1.bf16.msra.mxu0 0
        %899 = vmatprep.subr.bf16.mxu0 0
        %900 = vmatpush1.bf16.msra.mxu0 0
        %901 = vmatprep.subr.bf16.mxu0 0
        %902 = vmatpush1.bf16.msra.mxu0 0
        %903 = vmatprep.subr.bf16.mxu0 0
        %904 = vmatpush1.bf16.msra.mxu0 0
        %905 = vmatprep.subr.bf16.mxu0 0
        %906 = vmatpush1.bf16.msra.mxu0 0
        %907 = vmatprep.subr.bf16.mxu0 0
        %908 = vmatpush1.bf16.msra.mxu0 0
        %909 = vmatprep.mubr.bf16.mxu0 0
        %910 = vmatmul.mubr.bf16.gmra.mrb[0].mxu0 %v872
        %v911 = vpop.f32.mrb[0].mxu0
        %v912 = vadd.f32 0.0, %v911
        %v913 = vpop.f32.mrb[0].mxu0
        %v914 = vpop.f32.mrb[0].mxu0
        %v915 = vpop.f32.mrb[0].mxu0
        %916 = vdwg.mxu0
        %v918 = vsel %vm775, %v822, 0
        %v921 = vsel %vm827, %v576, 0
        %923 = vmatprep.subr.bf16.mxu0 0
        %924 = vmatpush1.bf16.msra.mxu0 %v921
        %925 = vmatprep.subr.bf16.mxu0 0
        %926 = vmatpush1.bf16.msra.mxu0 0
        %927 = vmatprep.subr.bf16.mxu0 0
        %928 = vmatpush1.bf16.msra.mxu0 0
        %929 = vmatprep.subr.bf16.mxu0 0
        %930 = vmatpush1.bf16.msra.mxu0 0
        %931 = vmatprep.subr.bf16.mxu0 0
        %932 = vmatpush1.bf16.msra.mxu0 0
        %933 = vmatprep.subr.bf16.mxu0 0
        %934 = vmatpush1.bf16.msra.mxu0 0
        %935 = vmatprep.subr.bf16.mxu0 0
        %936 = vmatpush1.bf16.msra.mxu0 0
        %937 = vmatprep.subr.bf16.mxu0 0
        %938 = vmatpush1.bf16.msra.mxu0 0
        %939 = vmatprep.subr.bf16.mxu0 0
        %940 = vmatpush1.bf16.msra.mxu0 0
        %941 = vmatprep.subr.bf16.mxu0 0
        %942 = vmatpush1.bf16.msra.mxu0 0
        %943 = vmatprep.subr.bf16.mxu0 0
        %944 = vmatpush1.bf16.msra.mxu0 0
        %945 = vmatprep.subr.bf16.mxu0 0
        %946 = vmatpush1.bf16.msra.mxu0 0
        %947 = vmatprep.subr.bf16.mxu0 0
        %948 = vmatpush1.bf16.msra.mxu0 0
        %949 = vmatprep.subr.bf16.mxu0 0
        %950 = vmatpush1.bf16.msra.mxu0 0
        %951 = vmatprep.subr.bf16.mxu0 0
        %952 = vmatpush1.bf16.msra.mxu0 0
        %953 = vmatprep.subr.bf16.mxu0 0
        %954 = vmatpush1.bf16.msra.mxu0 0
        %955 = vmatprep.mubr.bf16.mxu0 0
        %956 = vmatmul.mubr.bf16.gmra.mrb[0].mxu0 %v918
        %v957 = vpop.f32.mrb[0].mxu0
        %v958 = vadd.f32 0.0, %v957
        %v959 = vpop.f32.mrb[0].mxu0
        %v960 = vpop.f32.mrb[0].mxu0
        %v961 = vpop.f32.mrb[0].mxu0
        %962 = vdwg.mxu0
        %v964 = vsel %vm775, %v823, 0
        %v967 = vsel %vm827, %v577, 0
        %969 = vmatprep.subr.bf16.mxu0 0
        %970 = vmatpush1.bf16.msra.mxu0 %v967
        %971 = vmatprep.subr.bf16.mxu0 0
        %972 = vmatpush1.bf16.msra.mxu0 0
        %973 = vmatprep.subr.bf16.mxu0 0
        %974 = vmatpush1.bf16.msra.mxu0 0
        %975 = vmatprep.subr.bf16.mxu0 0
        %976 = vmatpush1.bf16.msra.mxu0 0
        %977 = vmatprep.subr.bf16.mxu0 0
        %978 = vmatpush1.bf16.msra.mxu0 0
        %979 = vmatprep.subr.bf16.mxu0 0
        %980 = vmatpush1.bf16.msra.mxu0 0
        %981 = vmatprep.subr.bf16.mxu0 0
        %982 = vmatpush1.bf16.msra.mxu0 0
        %983 = vmatprep.subr.bf16.mxu0 0
        %984 = vmatpush1.bf16.msra.mxu0 0
        %985 = vmatprep.subr.bf16.mxu0 0
        %986 = vmatpush1.bf16.msra.mxu0 0
        %987 = vmatprep.subr.bf16.mxu0 0
        %988 = vmatpush1.bf16.msra.mxu0 0
        %989 = vmatprep.subr.bf16.mxu0 0
        %990 = vmatpush1.bf16.msra.mxu0 0
        %991 = vmatprep.subr.bf16.mxu0 0
        %992 = vmatpush1.bf16.msra.mxu0 0
        %993 = vmatprep.subr.bf16.mxu0 0
        %994 = vmatpush1.bf16.msra.mxu0 0
        %995 = vmatprep.subr.bf16.mxu0 0
        %996 = vmatpush1.bf16.msra.mxu0 0
        %997 = vmatprep.subr.bf16.mxu0 0
        %998 = vmatpush1.bf16.msra.mxu0 0
        %999 = vmatprep.subr.bf16.mxu0 0
        %1000 = vmatpush1.bf16.msra.mxu0 0
        %1001 = vmatprep.mubr.bf16.mxu0 0
        %1002 = vmatmul.mubr.bf16.gmra.mrb[0].mxu0 %v964
        %v1003 = vpop.f32.mrb[0].mxu0
        %v1004 = vadd.f32 0.0, %v1003
        %v1005 = vpop.f32.mrb[0].mxu0
        %v1006 = vpop.f32.mrb[0].mxu0
        %v1007 = vpop.f32.mrb[0].mxu0
        %1008 = vdwg.mxu0
        %1010 = vrot.lane.b32.xlu0 %v912, 16
        %v1011 = vpop.permute.xlu0 %1010
        %1014 = vrot.lane.b32.xlu0 %v958, 32
        %v1015 = vpop.permute.xlu0 %1014
        %1018 = vrot.lane.b32.xlu0 %v1004, 48
        %v1019 = vpop.permute.xlu0 %1018
        %v1021 = vsel %vm581, %v866, %v1011
        %v1022 = vsel %vm355, %v1021, %v1015
        %vm1023 = vcmask 392192
        %v1024 = vsel %vm1023, %v1022, %v1019
        %v1025 = vpack.c.bf16 %v1024, %v1024
        %v1026 = vld [vmem:[%s3] sm:$0xf]
        %v1027 = vld [vmem:[%s3 + $0x4] sm:$0xf]
        %v1028 = vld [vmem:[%s3 + $0x8] sm:$0xf]
        %v1029 = vld [vmem:[%s3 + $0xc] sm:$0xf]
        %v1030 = vld [vmem:[%s3 + $0x10] sm:$0xf]
        %v1031 = vld [vmem:[%s3 + $0x14] sm:$0xf]
        %v1032 = vld [vmem:[%s3 + $0x18] sm:$0xf]
        %v1033 = vld [vmem:[%s3 + $0x1c] sm:$0xf]
        %v1034 = vlaneseq
        %v1035 = vshrl.u32 %v1034, 7
        %v1036 = vsub.s32 4, %v1035
        %v1037 = vrot.slane %v351, %v1036
        %v1046 = vunpack.c.l.b16 %v1026
        %v1047 = vunpack.c.l.b16 %v1027
        %v1048 = vunpack.c.l.b16 %v1028
        %v1049 = vunpack.c.l.b16 %v1029
        %v1050 = vunpack.c.l.b16 %v1030
        %v1051 = vunpack.c.l.b16 %v1031
        %v1052 = vunpack.c.l.b16 %v1032
        %v1053 = vunpack.c.l.b16 %v1033
        %v1054 = vpack.c.b16 %v1047, %v1046
        %v1055 = vpack.c.b16 %v1049, %v1048
        %v1056 = vpack.c.b16 %v1051, %v1050
        %v1057 = vpack.c.b16 %v1053, %v1052
        %v1063 = vsel %vm505, %v1025, 0
        %1065 = vmatprep.subr.bf16.mxu0 0
        %1066 = vmatpush1.bf16.msra.mxu0 %v1054
        %1067 = vmatprep.subr.bf16.mxu0 0
        %1068 = vmatpush1.bf16.msra.mxu0 %v1055
        %1069 = vmatprep.subr.bf16.mxu0 0
        %1070 = vmatpush1.bf16.msra.mxu0 %v1056
        %1071 = vmatprep.subr.bf16.mxu0 0
        %1072 = vmatpush1.bf16.msra.mxu0 %v1057
        %1073 = vmatprep.subr.bf16.mxu0 0
        %1074 = vmatpush1.bf16.msra.mxu0 0
        %1075 = vmatprep.subr.bf16.mxu0 0
        %1076 = vmatpush1.bf16.msra.mxu0 0
        %1077 = vmatprep.subr.bf16.mxu0 0
        %1078 = vmatpush1.bf16.msra.mxu0 0
        %1079 = vmatprep.subr.bf16.mxu0 0
        %1080 = vmatpush1.bf16.msra.mxu0 0
        %1081 = vmatprep.subr.bf16.mxu0 0
        %1082 = vmatpush1.bf16.msra.mxu0 0
        %1083 = vmatprep.subr.bf16.mxu0 0
        %1084 = vmatpush1.bf16.msra.mxu0 0
        %1085 = vmatprep.subr.bf16.mxu0 0
        %1086 = vmatpush1.bf16.msra.mxu0 0
        %1087 = vmatprep.subr.bf16.mxu0 0
        %1088 = vmatpush1.bf16.msra.mxu0 0
        %1089 = vmatprep.subr.bf16.mxu0 0
        %1090 = vmatpush1.bf16.msra.mxu0 0
        %1091 = vmatprep.subr.bf16.mxu0 0
        %1092 = vmatpush1.bf16.msra.mxu0 0
        %1093 = vmatprep.subr.bf16.mxu0 0
        %1094 = vmatpush1.bf16.msra.mxu0 0
        %1095 = vmatprep.subr.bf16.mxu0 0
        %1096 = vmatpush1.bf16.msra.mxu0 0
        %1097 = vmatprep.mubr.bf16.mxu0 0
        %1098 = vmatmul.mubr.bf16.gmra.mrb[0].mxu0 %v1063
        %v1099 = vpop.f32.mrb[0].mxu0
        %v1100 = vadd.f32 %v1037, %v1099
        %v1101 = vpop.f32.mrb[0].mxu0
        %v1102 = vpop.f32.mrb[0].mxu0
        %v1103 = vpop.f32.mrb[0].mxu0
        %1104 = vdwg.mxu0
        %v1105 = vpack.c.bf16 %v1100, %v1100
        %v1106 = vld [vmem:[%s4] sm:$0xf]
        %v1107 = vld [vmem:[%s4 + $0x4] sm:$0xf]
        %v1108 = vld [vmem:[%s4 + $0x8] sm:$0xf]
        %v1109 = vld [vmem:[%s4 + $0xc] sm:$0xf]
        %v1110 = vld [vmem:[%s4 + $0x10] sm:$0xf]
        %v1111 = vld [vmem:[%s4 + $0x14] sm:$0xf]
        %v1112 = vld [vmem:[%s4 + $0x18] sm:$0xf]
        %v1113 = vld [vmem:[%s4 + $0x1c] sm:$0xf]
        %v1114 = vlaneseq
        %v1115 = vshrl.u32 %v1114, 7
        %v1116 = vsub.s32 5, %v1115
        %v1117 = vrot.slane %v351, %v1116
        %v1126 = vunpack.c.l.b16 %v1106
        %v1127 = vunpack.c.l.b16 %v1107
        %v1128 = vunpack.c.l.b16 %v1108
        %v1129 = vunpack.c.l.b16 %v1109
        %v1130 = vunpack.c.l.b16 %v1110
        %v1131 = vunpack.c.l.b16 %v1111
        %v1132 = vunpack.c.l.b16 %v1112
        %v1133 = vunpack.c.l.b16 %v1113
        %v1134 = vpack.c.b16 %v1127, %v1126
        %v1135 = vpack.c.b16 %v1129, %v1128
        %v1136 = vpack.c.b16 %v1131, %v1130
        %v1137 = vpack.c.b16 %v1133, %v1132
        %v1143 = vsel %vm505, %v1105, 0
        %1145 = vmatprep.subr.bf16.mxu0 0
        %1146 = vmatpush1.bf16.msra.mxu0 %v1134
        %1147 = vmatprep.subr.bf16.mxu0 0
        %1148 = vmatpush1.bf16.msra.mxu0 %v1135
        %1149 = vmatprep.subr.bf16.mxu0 0
        %1150 = vmatpush1.bf16.msra.mxu0 %v1136
        %1151 = vmatprep.subr.bf16.mxu0 0
        %1152 = vmatpush1.bf16.msra.mxu0 %v1137
        %1153 = vmatprep.subr.bf16.mxu0 0
        %1154 = vmatpush1.bf16.msra.mxu0 0
        %1155 = vmatprep.subr.bf16.mxu0 0
        %1156 = vmatpush1.bf16.msra.mxu0 0
        %1157 = vmatprep.subr.bf16.mxu0 0
        %1158 = vmatpush1.bf16.msra.mxu0 0
        %1159 = vmatprep.subr.bf16.mxu0 0
        %1160 = vmatpush1.bf16.msra.mxu0 0
        %1161 = vmatprep.subr.bf16.mxu0 0
        %1162 = vmatpush1.bf16.msra.mxu0 0
        %1163 = vmatprep.subr.bf16.mxu0 0
        %1164 = vmatpush1.bf16.msra.mxu0 0
        %1165 = vmatprep.subr.bf16.mxu0 0
        %1166 = vmatpush1.bf16.msra.mxu0 0
        %1167 = vmatprep.subr.bf16.mxu0 0
        %1168 = vmatpush1.bf16.msra.mxu0 0
        %1169 = vmatprep.subr.bf16.mxu0 0
        %1170 = vmatpush1.bf16.msra.mxu0 0
        %1171 = vmatprep.subr.bf16.mxu0 0
        %1172 = vmatpush1.bf16.msra.mxu0 0
        %1173 = vmatprep.subr.bf16.mxu0 0
        %1174 = vmatpush1.bf16.msra.mxu0 0
        %1175 = vmatprep.subr.bf16.mxu0 0
        %1176 = vmatpush1.bf16.msra.mxu0 0
        %1177 = vmatprep.mubr.bf16.mxu0 0
        %1178 = vmatmul.mubr.bf16.gmra.mrb[0].mxu0 %v1143
        %v1179 = vpop.f32.mrb[0].mxu0
        %v1180 = vadd.f32 %v1117, %v1179
        %v1181 = vpop.f32.mrb[0].mxu0
        %v1182 = vpop.f32.mrb[0].mxu0
        %v1183 = vpop.f32.mrb[0].mxu0
        %1184 = vdwg.mxu0
        %v1185 = vmax.f32 %v1180, 0.0
        %v1186 = vadd.f32 %v354, %v1185
        %v1187 = vsel %vm355, %v1186, 0.0
        %1188 = vadd.xlane.f32.xlu0 %v1187
        %v1189 = vpop.xlane.xlu0 %1188
        %v1190 = vmul.f32 %v1189, %v359
        %v1191 = vmul.f32 %v1186, %v1186
        %v1192 = vsel %vm355, %v1191, 0.0
        %1193 = vadd.xlane.f32.xlu0 %v1192
        %v1194 = vpop.xlane.xlu0 %1193
        %v1195 = vmul.f32 %v1194, %v359
        %v1196 = vmul.f32 %v1190, %v1190
        %v1197 = vsub.f32 %v1195, %v1196
        %v1198 = vmax.f32 %v1197, 0.0
        %v1199 = vsub.f32 %v1186, %v1190
        %v1200 = vadd.f32 %v1198, 1e-06
        %v1201 = vrsqrt.pop %v1200
        %v1202 = vmul.f32 %v1199, %v1201
        %v1203 = vlaneseq
        %v1204 = vshrl.u32 %v1203, 7
        %v1205 = vsub.s32 6, %v1204
        %v1206 = vrot.slane %v351, %v1205
        %v1207 = vmul.f32 %v1202, %v1206
        %v1208 = vlaneseq
        %v1209 = vshrl.u32 %v1208, 7
        %v1210 = vsub.s32 7, %v1209
        %v1211 = vrot.slane %v351, %v1210
        %v1212 = vadd.f32 %v1207, %v1211
        %v1213 = vpack.c.bf16 %v1212, %v1212
        %v1214 = vld [vmem:[#allocation7] sm:$0xf]
        %v1215 = vld [vmem:[#allocation7 + $0x4] sm:$0xf]
        %v1216 = vld [vmem:[#allocation7 + $0x8] sm:$0xf]
        %v1217 = vld [vmem:[#allocation7 + $0xc] sm:$0xf]
        %v1218 = vlaneseq
        %v1219 = vshrl.u32 %v1218, 7
        %v1220 = vsub.s32 0, %v1219
        %v1221 = vrot.slane %v353, %v1220
        %v1226 = vunpack.c.l.b16 %v1214
        %v1227 = vunpack.c.l.b16 %v1215
        %v1228 = vunpack.c.l.b16 %v1216
        %v1229 = vunpack.c.l.b16 %v1217
        %v1230 = vpack.c.b16 %v1227, %v1226
        %v1231 = vpack.c.b16 %v1229, %v1228
        %v1235 = vsel %vm355, %v1213, 0
        %1237 = vmatprep.subr.bf16.mxu0 0
        %1238 = vmatpush1.bf16.msra.mxu0 %v1230
        %1239 = vmatprep.subr.bf16.mxu0 0
        %1240 = vmatpush1.bf16.msra.mxu0 %v1231
        %1241 = vmatprep.subr.bf16.mxu0 0
        %1242 = vmatpush1.bf16.msra.mxu0 0
        %1243 = vmatprep.subr.bf16.mxu0 0
        %1244 = vmatpush1.bf16.msra.mxu0 0
        %1245 = vmatprep.subr.bf16.mxu0 0
        %1246 = vmatpush1.bf16.msra.mxu0 0
        %1247 = vmatprep.subr.bf16.mxu0 0
        %1248 = vmatpush1.bf16.msra.mxu0 0
        %1249 = vmatprep.subr.bf16.mxu0 0
        %1250 = vmatpush1.bf16.msra.mxu0 0
        %1251 = vmatprep.subr.bf16.mxu0 0
        %1252 = vmatpush1.bf16.msra.mxu0 0
        %1253 = vmatprep.subr.bf16.mxu0 0
        %1254 = vmatpush1.bf16.msra.mxu0 0
        %1255 = vmatprep.subr.bf16.mxu0 0
        %1256 = vmatpush1.bf16.msra.mxu0 0
        %1257 = vmatprep.subr.bf16.mxu0 0
        %1258 = vmatpush1.bf16.msra.mxu0 0
        %1259 = vmatprep.subr.bf16.mxu0 0
        %1260 = vmatpush1.bf16.msra.mxu0 0
        %1261 = vmatprep.subr.bf16.mxu0 0
        %1262 = vmatpush1.bf16.msra.mxu0 0
        %1263 = vmatprep.subr.bf16.mxu0 0
        %1264 = vmatpush1.bf16.msra.mxu0 0
        %1265 = vmatprep.subr.bf16.mxu0 0
        %1266 = vmatpush1.bf16.msra.mxu0 0
        %1267 = vmatprep.subr.bf16.mxu0 0
        %1268 = vmatpush1.bf16.msra.mxu0 0
        %1269 = vmatprep.mubr.bf16.mxu0 0
        %1270 = vmatmul.mubr.bf16.gmra.mrb[0].mxu0 %v1235
        %v1271 = vpop.f32.mrb[0].mxu0
        %v1272 = vadd.f32 %v1221, %v1271
        %v1273 = vpop.f32.mrb[0].mxu0
        %v1274 = vpop.f32.mrb[0].mxu0
        %v1275 = vpop.f32.mrb[0].mxu0
        %1276 = vdwg.mxu0
        %v1277 = vmul.f32 %v1272, 0.5
        %v1278 = vmul.f32 %v1272, 0.70710677
        %v1279 = vand.u32 2147483647, %v1278
        %v1280 = vmul.f32 %v1279, 0.3275911
        %v1281 = vadd.f32 %v1280, 1.0
        %v1282 = vrcp.pop %v1281
        %v1283 = vmul.f32 1.0, %v1282
        %v1284 = vmul.f32 %v1283, 1.0614054
        %v1285 = vadd.f32 %v1284, -1.4531521
        %v1286 = vmul.f32 %v1283, %v1285
        %v1287 = vadd.f32 %v1286, 1.4214138
        %v1288 = vmul.f32 %v1283, %v1287
        %v1289 = vadd.f32 %v1288, -0.28449672
        %v1290 = vmul.f32 %v1283, %v1289
        %v1291 = vadd.f32 %v1290, 0.2548296
        %v1292 = vmul.f32 %v1283, %v1291
        %v1293 = vsub.f32 0.0, %v1279
        %v1294 = vmul.f32 %v1293, %v1279
        %v1295 = vmul.f32 %v1294, 1.442695
        %v1296 = vpow.pop %v1295
        %v1297 = vmul.f32 %v1292, %v1296
        %v1298 = vsub.f32 1.0, %v1297
        %vm1299 = vcmp.lt.f32.partialorder %v1278, 0.0
        %v1300 = vsub.f32 0.0, %v1298
        %v1301 = vsel %vm1299, %v1300, %v1298
        %v1302 = vadd.f32 %v1301, 1.0
        %v1303 = vmul.f32 %v1277, %v1302
        %v1304 = vpack.c.bf16 %v1303, %v1303
        %v1305 = vld [vmem:[%s6] sm:$0xf]
        %v1306 = vld [vmem:[%s6 + $0x4] sm:$0xf]
        %v1307 = vld [vmem:[%s6 + $0x8] sm:$0xf]
        %v1308 = vld [vmem:[%s6 + $0xc] sm:$0xf]
        %v1309 = vld [vmem:[%s6 + $0x10] sm:$0xf]
        %v1310 = vld [vmem:[%s6 + $0x14] sm:$0xf]
        %v1311 = vld [vmem:[%s6 + $0x18] sm:$0xf]
        %v1312 = vld [vmem:[%s6 + $0x1c] sm:$0xf]
        %v1313 = vld [vmem:[%s6 + $0x20] sm:$0xf]
        %v1314 = vld [vmem:[%s6 + $0x24] sm:$0xf]
        %v1315 = vld [vmem:[%s6 + $0x28] sm:$0xf]
        %v1316 = vld [vmem:[%s6 + $0x2c] sm:$0xf]
        %v1317 = vld [vmem:[%s6 + $0x30] sm:$0xf]
        %v1318 = vld [vmem:[%s6 + $0x34] sm:$0xf]
        %v1319 = vld [vmem:[%s6 + $0x38] sm:$0xf]
        %v1320 = vld [vmem:[%s6 + $0x3c] sm:$0xf]
        %v1321 = vlaneseq
        %v1322 = vshrl.u32 %v1321, 7
        %v1323 = vsub.s32 1, %v1322
        %v1324 = vrot.slane %v353, %v1323
        %v1341 = vunpack.c.l.b16 %v1305
        %v1342 = vunpack.c.l.b16 %v1306
        %v1343 = vunpack.c.l.b16 %v1307
        %v1344 = vunpack.c.l.b16 %v1308
        %v1345 = vunpack.c.l.b16 %v1309
        %v1346 = vunpack.c.l.b16 %v1310
        %v1347 = vunpack.c.l.b16 %v1311
        %v1348 = vunpack.c.l.b16 %v1312
        %v1349 = vunpack.c.l.b16 %v1313
        %v1350 = vunpack.c.l.b16 %v1314
        %v1351 = vunpack.c.l.b16 %v1315
        %v1352 = vunpack.c.l.b16 %v1316
        %v1353 = vunpack.c.l.b16 %v1317
        %v1354 = vunpack.c.l.b16 %v1318
        %v1355 = vunpack.c.l.b16 %v1319
        %v1356 = vunpack.c.l.b16 %v1320
        %v1357 = vpack.c.b16 %v1342, %v1341
        %v1358 = vpack.c.b16 %v1344, %v1343
        %v1359 = vpack.c.b16 %v1346, %v1345
        %v1360 = vpack.c.b16 %v1348, %v1347
        %v1361 = vpack.c.b16 %v1350, %v1349
        %v1362 = vpack.c.b16 %v1352, %v1351
        %v1363 = vpack.c.b16 %v1354, %v1353
        %v1364 = vpack.c.b16 %v1356, %v1355
        %1373 = vmatprep.subr.bf16.mxu0 0
        %1374 = vmatpush1.bf16.msra.mxu0 %v1357
        %1375 = vmatprep.subr.bf16.mxu0 0
        %1376 = vmatpush1.bf16.msra.mxu0 %v1358
        %1377 = vmatprep.subr.bf16.mxu0 0
        %1378 = vmatpush1.bf16.msra.mxu0 %v1359
        %1379 = vmatprep.subr.bf16.mxu0 0
        %1380 = vmatpush1.bf16.msra.mxu0 %v1360
        %1381 = vmatprep.subr.bf16.mxu0 0
        %1382 = vmatpush1.bf16.msra.mxu0 %v1361
        %1383 = vmatprep.subr.bf16.mxu0 0
        %1384 = vmatpush1.bf16.msra.mxu0 %v1362
        %1385 = vmatprep.subr.bf16.mxu0 0
        %1386 = vmatpush1.bf16.msra.mxu0 %v1363
        %1387 = vmatprep.subr.bf16.mxu0 0
        %1388 = vmatpush1.bf16.msra.mxu0 %v1364
        %1389 = vmatprep.subr.bf16.mxu0 0
        %1390 = vmatpush1.bf16.msra.mxu0 0
        %1391 = vmatprep.subr.bf16.mxu0 0
        %1392 = vmatpush1.bf16.msra.mxu0 0
        %1393 = vmatprep.subr.bf16.mxu0 0
        %1394 = vmatpush1.bf16.msra.mxu0 0
        %1395 = vmatprep.subr.bf16.mxu0 0
        %1396 = vmatpush1.bf16.msra.mxu0 0
        %1397 = vmatprep.subr.bf16.mxu0 0
        %1398 = vmatpush1.bf16.msra.mxu0 0
        %1399 = vmatprep.subr.bf16.mxu0 0
        %1400 = vmatpush1.bf16.msra.mxu0 0
        %1401 = vmatprep.subr.bf16.mxu0 0
        %1402 = vmatpush1.bf16.msra.mxu0 0
        %1403 = vmatprep.subr.bf16.mxu0 0
        %1404 = vmatpush1.bf16.msra.mxu0 0
        %1405 = vmatprep.mubr.bf16.mxu0 0
        %1406 = vmatmul.mubr.bf16.gmra.mrb[0].mxu0 %v1304
        %v1407 = vpop.f32.mrb[0].mxu0
        %v1408 = vadd.f32 %v1324, %v1407
        %v1409 = vpop.f32.mrb[0].mxu0
        %v1410 = vpop.f32.mrb[0].mxu0
        %v1411 = vpop.f32.mrb[0].mxu0
        %1412 = vdwg.mxu0
        %v1413 = vmul.f32 %v1408, 0.5
        %v1414 = vmul.f32 %v1408, 0.70710677
        %v1415 = vand.u32 2147483647, %v1414
        %v1416 = vmul.f32 %v1415, 0.3275911
        %v1417 = vadd.f32 %v1416, 1.0
        %v1418 = vrcp.pop %v1417
        %v1419 = vmul.f32 1.0, %v1418
        %v1420 = vmul.f32 %v1419, 1.0614054
        %v1421 = vadd.f32 %v1420, -1.4531521
        %v1422 = vmul.f32 %v1419, %v1421
        %v1423 = vadd.f32 %v1422, 1.4214138
        %v1424 = vmul.f32 %v1419, %v1423
        %v1425 = vadd.f32 %v1424, -0.28449672
        %v1426 = vmul.f32 %v1419, %v1425
        %v1427 = vadd.f32 %v1426, 0.2548296
        %v1428 = vmul.f32 %v1419, %v1427
        %v1429 = vsub.f32 0.0, %v1415
        %v1430 = vmul.f32 %v1429, %v1415
        %v1431 = vmul.f32 %v1430, 1.442695
        %v1432 = vpow.pop %v1431
        %v1433 = vmul.f32 %v1428, %v1432
        %v1434 = vsub.f32 1.0, %v1433
        %vm1435 = vcmp.lt.f32.partialorder %v1414, 0.0
        %v1436 = vsub.f32 0.0, %v1434
        %v1437 = vsel %vm1435, %v1436, %v1434
        %v1438 = vadd.f32 %v1437, 1.0
        %v1439 = vmul.f32 %v1413, %v1438
        %v1440 = vadd.f32 %v1186, %v1439
        %1441 = vst.msk [vmem:[%s349] sm:$0xff] %vm355, %v1440
        %s1442 = sand.u32 %s207, 1
        %s1443 = scalar_lea.sflag [#allocation4], %s1442
        %s1444 = sand.u32 %s207, 1
        %s1445 = smul.addr %s1444, 8
        %s1446 = scalar_lea.vmem [#allocation8], %s1445
        // Predicated region
        $region65: #{tpu_custom_call.1} parent=51 // pred_check
          %p1447 = pneg %p217
        $region66: #{tpu_custom_call.1} parent=51 // pred_check_branch
          %1449 = sbr.rel (%p1447) target = $region68
        $region67: #{tpu_custom_call.1} parent=51 // pred_region
          %s1451 = ssub.s32 128, 128
          %1452 = vsyncadd %s1443, %s1451
          %s1453 = smul.addr %s26, 128
          %s1454 = scalar_lea.hbm %s8, %s1453
          %s1456 = sshll.u32 %s1446, 4
          %s1457 = int_to_ptr.vmem [resolvable:$true] %s1456
          %1459 = dma.vmem_to_hbm [thread:$0]  %s1457, 128, %s1454, %s1443
        $region68: #{tpu_custom_call.1} parent=51 // pred_fallthru
          _
      $region52: #{tpu_custom_call.1} parent=5 // pred_fallthru
        _
      %p1460 = scmp.le.s32.totalorder 2, %s21
      // Predicated region
      $region69: #{tpu_custom_call.1} parent=5 // pred_check
        %p1461 = pneg %p1460
      $region70: #{tpu_custom_call.1} parent=5 // pred_check_branch
        %1463 = sbr.rel (%p1461) target = $region72
      $region71: #{tpu_custom_call.1} parent=5 // pred_region
        %s1464 = ssub.s32 %s21, 2
        // Predicated region
        $region73: #{tpu_custom_call.1} parent=71 // pred_check
          %p1465 = pneg %p223
        $region74: #{tpu_custom_call.1} parent=71 // pred_check_branch
          %1467 = sbr.rel (%p1465) target = $region76
        $region75: #{tpu_custom_call.1} parent=71 // pred_region
          %s1468 = sand.u32 %s208, 1
          %s1469 = scalar_lea.sflag [#allocation4], %s1468
          %s1470 = sand.u32 %s208, 1
          %s1471 = smul.addr %s1470, 8
          %s1472 = scalar_lea.vmem [#allocation8], %s1471
          %1473 = dma.done %s1469, 128
        $region76: #{tpu_custom_call.1} parent=71 // pred_fallthru
          _
      $region72: #{tpu_custom_call.1} parent=5 // pred_fallthru
        _
    $region6: #{tpu_custom_call.1} parent=1 // loop_footer
      %s25 = sadd.s32 1, %s21
    $region7: #{tpu_custom_call.1} parent=1 // loop_footer_branch
      %20 = sbr.rel target = $region3
    $region8: #{tpu_custom_call.1} parent=1 // loop_exit
      _
    %1474 = vsyncpa [#allocation3], 1
    %s1475 = scalar_lea.sflag [#allocation3], 1
    %1476 = vsyncpa %s1475, 1
    %1477 = vsyncpa [#allocation6], 1
    %1478 = vsyncpa [#allocation4], 1
    %s1479 = scalar_lea.sflag [#allocation4], 1
    %1480 = vsyncpa %s1479, 1

</llo_original>
